<compile_context>
chip_gen: v7x
topology: tpu7x:2x2x1
jax: 0.10.0
libtpu: 0.0.40
codegen_flags: <defaults>
</compile_context>

<pallas_src>
import jax
import jax.numpy as jnp
from jax.experimental import pallas as pl
from jax.experimental.pallas import tpu as pltpu


def _mlp(z, w1t, w2t, s1, b1e, s2, b2e, bt):
    """Linear -> folded BN -> ReLU -> Linear -> folded BN -> Sigmoid.

    z:   (bt*ct, S)  rows ordered (batch-in-tile, channel)
    w1t: (S, d)   w2t: (d, S)
    s1, s2:  (ct, 1)   per-channel BN scales
    b1e:(ct, d)  b2e:(ct, S)  effective biases (linear bias + BN shift folded)
    """
    if bt > 1:  # tile per-channel params across the batch rows of this block
        s1 = jnp.tile(s1, (bt, 1))
        b1e = jnp.tile(b1e, (bt, 1))
        s2 = jnp.tile(s2, (bt, 1))
        b2e = jnp.tile(b2e, (bt, 1))
    h = jnp.dot(z, w1t, preferred_element_type=jnp.float32)       # (R, d)
    h = h * s1 + b1e                                              # BN1 (folded)
    h = jnp.maximum(h, 0.0) * s2                                  # ReLU, BN2 scale
    y = jnp.dot(h, w2t, preferred_element_type=jnp.float32) + b2e # (R, S), BN2 shift
    return jax.nn.sigmoid(y)


def gib_kernel(x_ref, pw_ref, ph_ref, sw_ref, sh_ref,
               w1a, w2a, s1a, b1a, s2a, b2a,
               w1b, w2b, s1b, b1b, s2b, b2b,
               o_ref):
    bt, ct, HW = x_ref.shape
    x = x_ref[...].astype(jnp.float32)            # (bt, ct, HW) lane-dense load
    x2 = x.reshape(bt * ct, HW)                   # merge leading dims only

    # Adaptive average pools as matmuls against constant (pre-scaled) 0/1 masks.
    xh = jnp.dot(x2, pw_ref[...], preferred_element_type=jnp.float32)  # (R, W) mean over H
    xw = jnp.dot(x2, ph_ref[...], preferred_element_type=jnp.float32)  # (R, H) mean over W

    gh = _mlp(xh, w1a[...], w2a[...], s1a[...], b1a[...], s2a[...], b1a is None and None or b1a[...], bt) if False else \
         _mlp(xh, w1a[...], w2a[...], s1a[...], b1a[...], s2a[...], b2a[...], bt)   # fc1
    gw = _mlp(xw, w1b[...], w2b[...], s1b[...], b1b[...], s2b[...], b2b[...], bt)   # fc2

    # Broadcast gh over H / gw over W back onto the flat lane-dense layout
    # (the 0.5 from the module's "/2" is folded into the scatter matrices).
    gate = (jnp.dot(gh, sw_ref[...], preferred_element_type=jnp.float32) +
            jnp.dot(gw, sh_ref[...], preferred_element_type=jnp.float32))  # (R, HW)

    o_ref[...] = (gate.reshape(bt, ct, HW) * x).astype(o_ref.dtype)


def make_params(key, in_channel, in_shape):
    """Deterministic synthetic parameters (PyTorch-style init) for both fc branches."""
    d = max(in_shape // 2, 1)

    def branch(k):
        k1, k2, k3, k4 = jax.random.split(k, 4)
        bound1 = 1.0 / (in_shape ** 0.5)
        bound2 = 1.0 / (d ** 0.5)
        w1 = jax.random.uniform(k1, (d, in_shape), jnp.float32, -bound1, bound1)
        b1 = jax.random.uniform(k2, (d,), jnp.float32, -bound1, bound1)
        w2 = jax.random.uniform(k3, (in_shape, d), jnp.float32, -bound2, bound2)
        b2 = jax.random.uniform(k4, (in_shape,), jnp.float32, -bound2, bound2)
        ones = jnp.ones((in_channel,), jnp.float32)
        zeros = jnp.zeros((in_channel,), jnp.float32)
        return dict(w1=w1, b1=b1, w2=w2, b2=b2,
                    gamma1=ones, beta1=zeros, mean1=zeros, var1=ones,
                    gamma2=ones, beta2=zeros, mean2=zeros, var2=ones)

    ka, kb = jax.random.split(key)
    return branch(ka), branch(kb)


def fold_branch(p, eps=1e-5):
    """Fold eval-mode BatchNorm1d into per-channel scale + effective bias."""
    s1 = p["gamma1"] / jnp.sqrt(p["var1"] + eps)
    t1 = p["beta1"] - p["mean1"] * s1
    s2 = p["gamma2"] / jnp.sqrt(p["var2"] + eps)
    t2 = p["beta2"] - p["mean2"] * s2
    return (p["w1"].T,                                          # (S, d)
            p["w2"].T,                                          # (d, S)
            s1[:, None],                                        # (C, 1)
            p["b1"][None, :] * s1[:, None] + t1[:, None],       # (C, d)
            s2[:, None],                                        # (C, 1)
            p["b2"][None, :] * s2[:, None] + t2[:, None])       # (C, S)


def gib_forward(x, params_a, params_b, *, bt=None, ct=None):
    B, C, H, W = x.shape
    assert H == W, "GIB block requires square spatial dims (in_shape)"
    HW = H * W
    x_flat = x.reshape(B, C, HW)                  # lane-dense; free for NCHW

    # --- tile selection (keep x block a few MiB; keep >=2 grid steps) -------
    elem = x.dtype.itemsize
    target = 4 * 1024 * 1024
    if ct is None:
        ct = C
        while ct % 16 == 0 and ct * HW * elem > target:
            ct //= 2
    if bt is None:
        bt = 1
        while (bt * 2 <= B and B % (bt * 2) == 0
               and (bt * 2) * ct * HW * elem <= target
               and (B // (bt * 2)) * (C // ct) >= 2):
            bt *= 2
    assert B % bt == 0 and C % ct == 0
    grid = (B // bt, C // ct)

    # --- constant pooling / scatter matrices (tiny, ride the idle MXU) ------
    f = jnp.arange(HW)
    mask_w = (f % W)[:, None] == jnp.arange(W)[None, :]
    mask_h = (f // W)[:, None] == jnp.arange(H)[None, :]
    mask_w = mask_w.astype(jnp.float32)           # (HW, W)
    mask_h = mask_h.astype(jnp.float32)           # (HW, H)
    pool_w = mask_w / H                           # x @ pool_w == mean over H
    pool_h = mask_h / W                           # x @ pool_h == mean over W
    scat_w = mask_w.T * 0.5                       # gh @ scat_w broadcasts over H (and /2)
    scat_h = mask_h.T * 0.5                       # gw @ scat_h broadcasts over W (and /2)

    flat_a = fold_branch(params_a)
    flat_b = fold_branch(params_b)

    const = lambda shape: pl.BlockSpec(shape, lambda b, c: (0,) * len(shape))
    chan = lambda k: pl.BlockSpec((ct, k), lambda b, c: (c, 0))

    def branch_specs(p):
        w1t, w2t, s1, b1e, s2, b2e = p
        return [const(w1t.shape), const(w2t.shape),
                chan(1), chan(b1e.shape[1]), chan(1), chan(b2e.shape[1])]

    in_specs = ([pl.BlockSpec((bt, ct, HW), lambda b, c: (b, c, 0)),
                 const(pool_w.shape), const(pool_h.shape),
                 const(scat_w.shape), const(scat_h.shape)]
                + branch_specs(flat_a) + branch_specs(flat_b))

    out_flat = pl.pallas_call(
        gib_kernel,
        out_shape=jax.ShapeDtypeStruct((B, C, HW), x.dtype),
        grid_spec=pltpu.PrefetchScalarGridSpec(
            num_scalar_prefetch=0,
            grid=grid,
            in_specs=in_specs,
            out_specs=pl.BlockSpec((bt, ct, HW), lambda b, c: (b, c, 0)),
        ),
        compiler_params=pltpu.CompilerParams(
            dimension_semantics=("parallel", "parallel"),
            vmem_limit_bytes=32 * 1024 * 1024),
    )(x_flat, pool_w, pool_h, scat_w, scat_h, *flat_a, *flat_b)

    return out_flat.reshape(B, C, H, W)


def gib_reference(x, pa, pb, eps=1e-5):
    """Pure-JAX mirror of the PyTorch forward (eval-mode BatchNorm1d)."""
    def bn(h, g, b, m, v):
        return ((h - m[None, :, None]) / jnp.sqrt(v[None, :, None] + eps)
                * g[None, :, None] + b[None, :, None])

    def mlp(z, p):  # z: (B, C, S)
        h = jnp.einsum("bcs,ds->bcd", z, p["w1"]) + p["b1"]
        h = bn(h, p["gamma1"], p["beta1"], p["mean1"], p["var1"])
        h = jnp.maximum(h, 0.0)
        y = jnp.einsum("bcd,sd->bcs", h, p["w2"]) + p["b2"]
        y = bn(y, p["gamma2"], p["beta2"], p["mean2"], p["var2"])
        return jax.nn.sigmoid(y)

    xh = x.mean(axis=2)                  # (B, C, W)  pool over H
    xw = x.mean(axis=3)                  # (B, C, H)  pool over W
    gh = mlp(xh, pa)
    gw = mlp(xw, pb)
    gate = gh[:, :, None, :] * 0.5 + gw[:, :, :, None] * 0.5
    return gate * x


if __name__ == "__main__":
    B, C, H, W = 2, 4, 16, 16            # in_channel=4, in_shape=16
    key = jax.random.PRNGKey(0)
    kx, kp = jax.random.split(key)
    x = jax.random.normal(kx, (B, C, H, W), jnp.float32)
    params_a, params_b = make_params(kp, C, H)

    out = gib_forward(x, params_a, params_b)
    out = jax.block_until_ready(out)

    ref = gib_reference(x, params_a, params_b)
    assert out.shape == (B, C, H, W)
    max_err = float(jnp.max(jnp.abs(out - ref)))
    assert jnp.allclose(out, ref, atol=1e-4, rtol=1e-4), \
        f"mismatch vs reference (max abs err {max_err})"

    print("KERNEL_OK")
</pallas_src>

<mosaic_0001>
module attributes {stable_mosaic.version = 11 : i64} {
  func.func @gib_kernel(%arg0: i32, %arg1: i32, %arg2: memref<1x4x256xf32, #tpu.memory_space<vmem>>, %arg3: memref<256x16xf32, #tpu.memory_space<vmem>>, %arg4: memref<256x16xf32, #tpu.memory_space<vmem>>, %arg5: memref<16x256xf32, #tpu.memory_space<vmem>>, %arg6: memref<16x256xf32, #tpu.memory_space<vmem>>, %arg7: memref<16x8xf32, #tpu.memory_space<vmem>>, %arg8: memref<8x16xf32, #tpu.memory_space<vmem>>, %arg9: memref<4x1xf32, #tpu.memory_space<vmem>>, %arg10: memref<4x8xf32, #tpu.memory_space<vmem>>, %arg11: memref<4x1xf32, #tpu.memory_space<vmem>>, %arg12: memref<4x16xf32, #tpu.memory_space<vmem>>, %arg13: memref<16x8xf32, #tpu.memory_space<vmem>>, %arg14: memref<8x16xf32, #tpu.memory_space<vmem>>, %arg15: memref<4x1xf32, #tpu.memory_space<vmem>>, %arg16: memref<4x8xf32, #tpu.memory_space<vmem>>, %arg17: memref<4x1xf32, #tpu.memory_space<vmem>>, %arg18: memref<4x16xf32, #tpu.memory_space<vmem>>, %arg19: memref<1x4x256xf32, #tpu.memory_space<vmem>>) attributes {dimension_semantics = [#tpu.dimension_semantics<parallel>, #tpu.dimension_semantics<parallel>], iteration_bounds = array<i64: 2, 1>, scalar_prefetch = 0 : i64, scratch_operands = 0 : i64, tpu.core_type = #tpu.core_type<tc>, window_params = [{transform_indices = @transform_0, window_bounds = array<i64: 1, 4, 256>}, {pipeline_mode = #tpu.pipeline_mode<synchronous>, transform_indices = @transform_1, window_bounds = array<i64: 256, 16>}, {pipeline_mode = #tpu.pipeline_mode<synchronous>, transform_indices = @transform_2, window_bounds = array<i64: 256, 16>}, {pipeline_mode = #tpu.pipeline_mode<synchronous>, transform_indices = @transform_3, window_bounds = array<i64: 16, 256>}, {pipeline_mode = #tpu.pipeline_mode<synchronous>, transform_indices = @transform_4, window_bounds = array<i64: 16, 256>}, {pipeline_mode = #tpu.pipeline_mode<synchronous>, transform_indices = @transform_5, window_bounds = array<i64: 16, 8>}, {pipeline_mode = #tpu.pipeline_mode<synchronous>, transform_indices = @transform_6, window_bounds = array<i64: 8, 16>}, {transform_indices = @transform_7, window_bounds = array<i64: 4, 1>}, {transform_indices = @transform_8, window_bounds = array<i64: 4, 8>}, {transform_indices = @transform_9, window_bounds = array<i64: 4, 1>}, {transform_indices = @transform_10, window_bounds = array<i64: 4, 16>}, {pipeline_mode = #tpu.pipeline_mode<synchronous>, transform_indices = @transform_11, window_bounds = array<i64: 16, 8>}, {pipeline_mode = #tpu.pipeline_mode<synchronous>, transform_indices = @transform_12, window_bounds = array<i64: 8, 16>}, {transform_indices = @transform_13, window_bounds = array<i64: 4, 1>}, {transform_indices = @transform_14, window_bounds = array<i64: 4, 8>}, {transform_indices = @transform_15, window_bounds = array<i64: 4, 1>}, {transform_indices = @transform_16, window_bounds = array<i64: 4, 16>}, {transform_indices = @transform_17, window_bounds = array<i64: 1, 4, 256>}]} {
    %c0 = arith.constant 0 : index
    %c0_0 = arith.constant 0 : index
    %c0_1 = arith.constant 0 : index
    %0 = vector.load %arg2[%c0, %c0_0, %c0_1] : memref<1x4x256xf32, #tpu.memory_space<vmem>>, vector<1x4x256xf32>
    %1 = vector.shape_cast %0 : vector<1x4x256xf32> to vector<4x256xf32>
    %c0_2 = arith.constant 0 : index
    %c0_3 = arith.constant 0 : index
    %2 = vector.load %arg3[%c0_2, %c0_3] : memref<256x16xf32, #tpu.memory_space<vmem>>, vector<256x16xf32>
    %cst = arith.constant dense<0.000000e+00> : vector<4x16xf32>
    %3 = tpu.matmul %1, %2, %cst {dimension_numbers = #tpu.dot_dimension_numbers<[1], [0], [0], [1], [0, 0, 1, 1], [], []>} : vector<4x256xf32>, vector<256x16xf32>, vector<4x16xf32> -> vector<4x16xf32>
    %c0_4 = arith.constant 0 : index
    %c0_5 = arith.constant 0 : index
    %4 = vector.load %arg4[%c0_4, %c0_5] : memref<256x16xf32, #tpu.memory_space<vmem>>, vector<256x16xf32>
    %cst_6 = arith.constant dense<0.000000e+00> : vector<4x16xf32>
    %5 = tpu.matmul %1, %4, %cst_6 {dimension_numbers = #tpu.dot_dimension_numbers<[1], [0], [0], [1], [0, 0, 1, 1], [], []>} : vector<4x256xf32>, vector<256x16xf32>, vector<4x16xf32> -> vector<4x16xf32>
    %c0_7 = arith.constant 0 : index
    %c0_8 = arith.constant 0 : index
    %6 = vector.load %arg7[%c0_7, %c0_8] : memref<16x8xf32, #tpu.memory_space<vmem>>, vector<16x8xf32>
    %c0_9 = arith.constant 0 : index
    %c0_10 = arith.constant 0 : index
    %7 = vector.load %arg8[%c0_9, %c0_10] : memref<8x16xf32, #tpu.memory_space<vmem>>, vector<8x16xf32>
    %c0_11 = arith.constant 0 : index
    %c0_12 = arith.constant 0 : index
    %8 = vector.load %arg9[%c0_11, %c0_12] : memref<4x1xf32, #tpu.memory_space<vmem>>, vector<4x1xf32>
    %c0_13 = arith.constant 0 : index
    %c0_14 = arith.constant 0 : index
    %9 = vector.load %arg10[%c0_13, %c0_14] : memref<4x8xf32, #tpu.memory_space<vmem>>, vector<4x8xf32>
    %c0_15 = arith.constant 0 : index
    %c0_16 = arith.constant 0 : index
    %10 = vector.load %arg11[%c0_15, %c0_16] : memref<4x1xf32, #tpu.memory_space<vmem>>, vector<4x1xf32>
    %c0_17 = arith.constant 0 : index
    %c0_18 = arith.constant 0 : index
    %11 = vector.load %arg12[%c0_17, %c0_18] : memref<4x16xf32, #tpu.memory_space<vmem>>, vector<4x16xf32>
    %cst_19 = arith.constant dense<0.000000e+00> : vector<4x8xf32>
    %12 = tpu.matmul %3, %6, %cst_19 {dimension_numbers = #tpu.dot_dimension_numbers<[1], [0], [0], [1], [0, 0, 1, 1], [], []>} : vector<4x16xf32>, vector<16x8xf32>, vector<4x8xf32> -> vector<4x8xf32>
    %13 = vector.broadcast %8 : vector<4x1xf32> to vector<4x8xf32>
    %14 = arith.mulf %12, %13 : vector<4x8xf32>
    %15 = arith.addf %14, %9 : vector<4x8xf32>
    %cst_20 = arith.constant 0.000000e+00 : f32
    %16 = vector.broadcast %cst_20 : f32 to vector<4x8xf32>
    %17 = arith.maximumf %15, %16 : vector<4x8xf32>
    %18 = vector.broadcast %10 : vector<4x1xf32> to vector<4x8xf32>
    %19 = arith.mulf %17, %18 : vector<4x8xf32>
    %cst_21 = arith.constant dense<0.000000e+00> : vector<4x16xf32>
    %20 = tpu.matmul %19, %7, %cst_21 {dimension_numbers = #tpu.dot_dimension_numbers<[1], [0], [0], [1], [0, 0, 1, 1], [], []>} : vector<4x8xf32>, vector<8x16xf32>, vector<4x16xf32> -> vector<4x16xf32>
    %21 = arith.addf %20, %11 : vector<4x16xf32>
    %22 = arith.negf %21 : vector<4x16xf32>
    %23 = math.exp %22 : vector<4x16xf32>
    %cst_22 = arith.constant 1.000000e+00 : f32
    %24 = vector.broadcast %cst_22 : f32 to vector<4x16xf32>
    %25 = arith.addf %24, %23 : vector<4x16xf32>
    %26 = arith.divf %24, %25 : vector<4x16xf32>
    %c0_23 = arith.constant 0 : index
    %c0_24 = arith.constant 0 : index
    %27 = vector.load %arg13[%c0_23, %c0_24] : memref<16x8xf32, #tpu.memory_space<vmem>>, vector<16x8xf32>
    %c0_25 = arith.constant 0 : index
    %c0_26 = arith.constant 0 : index
    %28 = vector.load %arg14[%c0_25, %c0_26] : memref<8x16xf32, #tpu.memory_space<vmem>>, vector<8x16xf32>
    %c0_27 = arith.constant 0 : index
    %c0_28 = arith.constant 0 : index
    %29 = vector.load %arg15[%c0_27, %c0_28] : memref<4x1xf32, #tpu.memory_space<vmem>>, vector<4x1xf32>
    %c0_29 = arith.constant 0 : index
    %c0_30 = arith.constant 0 : index
    %30 = vector.load %arg16[%c0_29, %c0_30] : memref<4x8xf32, #tpu.memory_space<vmem>>, vector<4x8xf32>
    %c0_31 = arith.constant 0 : index
    %c0_32 = arith.constant 0 : index
    %31 = vector.load %arg17[%c0_31, %c0_32] : memref<4x1xf32, #tpu.memory_space<vmem>>, vector<4x1xf32>
    %c0_33 = arith.constant 0 : index
    %c0_34 = arith.constant 0 : index
    %32 = vector.load %arg18[%c0_33, %c0_34] : memref<4x16xf32, #tpu.memory_space<vmem>>, vector<4x16xf32>
    %cst_35 = arith.constant dense<0.000000e+00> : vector<4x8xf32>
    %33 = tpu.matmul %5, %27, %cst_35 {dimension_numbers = #tpu.dot_dimension_numbers<[1], [0], [0], [1], [0, 0, 1, 1], [], []>} : vector<4x16xf32>, vector<16x8xf32>, vector<4x8xf32> -> vector<4x8xf32>
    %34 = vector.broadcast %29 : vector<4x1xf32> to vector<4x8xf32>
    %35 = arith.mulf %33, %34 : vector<4x8xf32>
    %36 = arith.addf %35, %30 : vector<4x8xf32>
    %cst_36 = arith.constant 0.000000e+00 : f32
    %37 = vector.broadcast %cst_36 : f32 to vector<4x8xf32>
    %38 = arith.maximumf %36, %37 : vector<4x8xf32>
    %39 = vector.broadcast %31 : vector<4x1xf32> to vector<4x8xf32>
    %40 = arith.mulf %38, %39 : vector<4x8xf32>
    %cst_37 = arith.constant dense<0.000000e+00> : vector<4x16xf32>
    %41 = tpu.matmul %40, %28, %cst_37 {dimension_numbers = #tpu.dot_dimension_numbers<[1], [0], [0], [1], [0, 0, 1, 1], [], []>} : vector<4x8xf32>, vector<8x16xf32>, vector<4x16xf32> -> vector<4x16xf32>
    %42 = arith.addf %41, %32 : vector<4x16xf32>
    %43 = arith.negf %42 : vector<4x16xf32>
    %44 = math.exp %43 : vector<4x16xf32>
    %cst_38 = arith.constant 1.000000e+00 : f32
    %45 = vector.broadcast %cst_38 : f32 to vector<4x16xf32>
    %46 = arith.addf %45, %44 : vector<4x16xf32>
    %47 = arith.divf %45, %46 : vector<4x16xf32>
    %c0_39 = arith.constant 0 : index
    %c0_40 = arith.constant 0 : index
    %48 = vector.load %arg5[%c0_39, %c0_40] : memref<16x256xf32, #tpu.memory_space<vmem>>, vector<16x256xf32>
    %cst_41 = arith.constant dense<0.000000e+00> : vector<4x256xf32>
    %49 = tpu.matmul %26, %48, %cst_41 {dimension_numbers = #tpu.dot_dimension_numbers<[1], [0], [0], [1], [0, 0, 1, 1], [], []>} : vector<4x16xf32>, vector<16x256xf32>, vector<4x256xf32> -> vector<4x256xf32>
    %c0_42 = arith.constant 0 : index
    %c0_43 = arith.constant 0 : index
    %50 = vector.load %arg6[%c0_42, %c0_43] : memref<16x256xf32, #tpu.memory_space<vmem>>, vector<16x256xf32>
    %cst_44 = arith.constant dense<0.000000e+00> : vector<4x256xf32>
    %51 = tpu.matmul %47, %50, %cst_44 {dimension_numbers = #tpu.dot_dimension_numbers<[1], [0], [0], [1], [0, 0, 1, 1], [], []>} : vector<4x16xf32>, vector<16x256xf32>, vector<4x256xf32> -> vector<4x256xf32>
    %52 = arith.addf %49, %51 : vector<4x256xf32>
    %53 = vector.shape_cast %52 : vector<4x256xf32> to vector<1x4x256xf32>
    %54 = arith.mulf %53, %0 : vector<1x4x256xf32>
    %c0_45 = arith.constant 0 : index
    %c0_46 = arith.constant 0 : index
    %c0_47 = arith.constant 0 : index
    %55 = vector.load %arg19[%c0_45, %c0_46, %c0_47] : memref<1x4x256xf32, #tpu.memory_space<vmem>>, vector<1x4x256xf32>
    tpu.vector_store %arg19[%c0_45, %c0_46, %c0_47], %54 {strides = array<i32>} : memref<1x4x256xf32, #tpu.memory_space<vmem>>, vector<1x4x256xf32>,
    return
  }
  func.func @transform_0(%arg0: i32, %arg1: i32) -> (i32, i32, i32) {
    %c0_i32 = arith.constant 0 : i32
    %c0_i32_0 = arith.constant 0 : i32
    return %arg0, %arg1, %c0_i32 : i32, i32, i32
  }
  func.func @transform_1(%arg0: i32, %arg1: i32) -> (i32, i32) {
    %c0_i32 = arith.constant 0 : i32
    %c0_i32_0 = arith.constant 0 : i32
    %c0_i32_1 = arith.constant 0 : i32
    return %c0_i32, %c0_i32_0 : i32, i32
  }
  func.func @transform_2(%arg0: i32, %arg1: i32) -> (i32, i32) {
    %c0_i32 = arith.constant 0 : i32
    %c0_i32_0 = arith.constant 0 : i32
    %c0_i32_1 = arith.constant 0 : i32
    return %c0_i32, %c0_i32_0 : i32, i32
  }
  func.func @transform_3(%arg0: i32, %arg1: i32) -> (i32, i32) {
    %c0_i32 = arith.constant 0 : i32
    %c0_i32_0 = arith.constant 0 : i32
    %c0_i32_1 = arith.constant 0 : i32
    return %c0_i32, %c0_i32_0 : i32, i32
  }
  func.func @transform_4(%arg0: i32, %arg1: i32) -> (i32, i32) {
    %c0_i32 = arith.constant 0 : i32
    %c0_i32_0 = arith.constant 0 : i32
    %c0_i32_1 = arith.constant 0 : i32
    return %c0_i32, %c0_i32_0 : i32, i32
  }
  func.func @transform_5(%arg0: i32, %arg1: i32) -> (i32, i32) {
    %c0_i32 = arith.constant 0 : i32
    %c0_i32_0 = arith.constant 0 : i32
    %c0_i32_1 = arith.constant 0 : i32
    return %c0_i32, %c0_i32_0 : i32, i32
  }
  func.func @transform_6(%arg0: i32, %arg1: i32) -> (i32, i32) {
    %c0_i32 = arith.constant 0 : i32
    %c0_i32_0 = arith.constant 0 : i32
    %c0_i32_1 = arith.constant 0 : i32
    return %c0_i32, %c0_i32_0 : i32, i32
  }
  func.func @transform_7(%arg0: i32, %arg1: i32) -> (i32, i32) {
    %c0_i32 = arith.constant 0 : i32
    %c0_i32_0 = arith.constant 0 : i32
    return %arg1, %c0_i32 : i32, i32
  }
  func.func @transform_8(%arg0: i32, %arg1: i32) -> (i32, i32) {
    %c0_i32 = arith.constant 0 : i32
    %c0_i32_0 = arith.constant 0 : i32
    return %arg1, %c0_i32 : i32, i32
  }
  func.func @transform_9(%arg0: i32, %arg1: i32) -> (i32, i32) {
    %c0_i32 = arith.constant 0 : i32
    %c0_i32_0 = arith.constant 0 : i32
    return %arg1, %c0_i32 : i32, i32
  }
  func.func @transform_10(%arg0: i32, %arg1: i32) -> (i32, i32) {
    %c0_i32 = arith.constant 0 : i32
    %c0_i32_0 = arith.constant 0 : i32
    return %arg1, %c0_i32 : i32, i32
  }
  func.func @transform_11(%arg0: i32, %arg1: i32) -> (i32, i32) {
    %c0_i32 = arith.constant 0 : i32
    %c0_i32_0 = arith.constant 0 : i32
    %c0_i32_1 = arith.constant 0 : i32
    return %c0_i32, %c0_i32_0 : i32, i32
  }
  func.func @transform_12(%arg0: i32, %arg1: i32) -> (i32, i32) {
    %c0_i32 = arith.constant 0 : i32
    %c0_i32_0 = arith.constant 0 : i32
    %c0_i32_1 = arith.constant 0 : i32
    return %c0_i32, %c0_i32_0 : i32, i32
  }
  func.func @transform_13(%arg0: i32, %arg1: i32) -> (i32, i32) {
    %c0_i32 = arith.constant 0 : i32
    %c0_i32_0 = arith.constant 0 : i32
    return %arg1, %c0_i32 : i32, i32
  }
  func.func @transform_14(%arg0: i32, %arg1: i32) -> (i32, i32) {
    %c0_i32 = arith.constant 0 : i32
    %c0_i32_0 = arith.constant 0 : i32
    return %arg1, %c0_i32 : i32, i32
  }
  func.func @transform_15(%arg0: i32, %arg1: i32) -> (i32, i32) {
    %c0_i32 = arith.constant 0 : i32
    %c0_i32_0 = arith.constant 0 : i32
    return %arg1, %c0_i32 : i32, i32
  }
  func.func @transform_16(%arg0: i32, %arg1: i32) -> (i32, i32) {
    %c0_i32 = arith.constant 0 : i32
    %c0_i32_0 = arith.constant 0 : i32
    return %arg1, %c0_i32 : i32, i32
  }
  func.func @transform_17(%arg0: i32, %arg1: i32) -> (i32, i32, i32) {
    %c0_i32 = arith.constant 0 : i32
    %c0_i32_0 = arith.constant 0 : i32
    return %arg0, %arg1, %c0_i32 : i32, i32, i32
  }
}

</mosaic_0001>

<llo_original>
// kernel: tpu_custom_call.1
$region0: #{tpu_custom_call.1}
  #allocation0 [shape = 'u32[]', space=smem, size = 0x4, offset = 0x4, fixed_abs, tag = 'smem constant byte address 0x4 - core index']
  #allocation1 [shape = 'u32[144,128]{1,0:T(1,128)}', space=vmem, size = 0x12000, scoped, tag = 'internal scratch']
  %s0 = inlined_call_operand.vmem [shape: f32[2,4,256], index: 0, kind: input, shape index: {}]
  %s1 = inlined_call_operand.vmem [shape: f32[256,16], index: 1, kind: input, shape index: {}]
  %s2 = inlined_call_operand.vmem [shape: f32[256,16], index: 2, kind: input, shape index: {}]
  %s3 = inlined_call_operand.vmem [shape: f32[16,256], index: 3, kind: input, shape index: {}]
  %s4 = inlined_call_operand.vmem [shape: f32[16,256], index: 4, kind: input, shape index: {}]
  %s5 = inlined_call_operand.vmem [shape: f32[16,8], index: 5, kind: input, shape index: {}]
  %s6 = inlined_call_operand.vmem [shape: f32[8,16], index: 6, kind: input, shape index: {}]
  %s7 = inlined_call_operand.vmem [shape: f32[4,1], index: 7, kind: input, shape index: {}]
  %s8 = inlined_call_operand.vmem [shape: f32[4,8], index: 8, kind: input, shape index: {}]
  %s9 = inlined_call_operand.vmem [shape: f32[4,1], index: 9, kind: input, shape index: {}]
  %s10 = inlined_call_operand.vmem [shape: f32[4,16], index: 10, kind: input, shape index: {}]
  %s11 = inlined_call_operand.vmem [shape: f32[16,8], index: 11, kind: input, shape index: {}]
  %s12 = inlined_call_operand.vmem [shape: f32[8,16], index: 12, kind: input, shape index: {}]
  %s13 = inlined_call_operand.vmem [shape: f32[4,1], index: 13, kind: input, shape index: {}]
  %s14 = inlined_call_operand.vmem [shape: f32[4,8], index: 14, kind: input, shape index: {}]
  %s15 = inlined_call_operand.vmem [shape: f32[4,1], index: 15, kind: input, shape index: {}]
  %s16 = inlined_call_operand.vmem [shape: f32[4,16], index: 16, kind: input, shape index: {}]
  %s17 = inlined_call_operand.hbm [shape: f32[2,4,256], index: 17, kind: output, shape index: {}]
  %s18 = sld [smem:[#allocation0]]
  $region101: #{tpu_custom_call.1} parent=0
    _
  %s20 = ssub.s32 1, %s18
  %s21 = scalar_select 0, %s20, %s18
  $region1: #{tpu_custom_call.1} parent=0
    #allocation2 [shape = 'u8[8192]{0}', space=vmem, size = 0x2000, scoped, tag = 'output window, operand 0']
    #allocation3 [shape = 's32[2]{0}', space=sflag, size = 0x8, scoped, tag = 'scoped memory for tpu_custom_call.1']
    %22 = vsyncpa [#allocation3], 0
    %s23 = scalar_lea.sflag [#allocation3], 1
    %24 = vsyncpa %s23, 0
    loop: start=0, step=1, limit=4
    $region2: #{tpu_custom_call.1} parent=1 // loop_pre_header
      _
    $region3: #{tpu_custom_call.1} parent=1 // loop_header
      %s26 = sphi 0, %s30
      %p27 = scmp.ge.s32.totalorder %s26, 4
      %s33 = sphi 0, %s45
      %s34 = sphi 0, %s41
      %s35 = sphi 0, %s33
      %s36 = sphi 0, %s34
      %s37 = sphi 0, %s35
      %s38 = sphi 0, %s36
      %s50 = sphi 0, %s52
      %s53 = sphi 0, %s50
      %s54 = sphi 0, %s53
      %s70 = sphi 0, %s54
      %s74 = sphi 0, %s74
      %s76 = sphi 0, %s74
      %s77 = sphi 0, %s76
      %s91 = sphi 0, %s77
      %s95 = sphi 0, %s95
      %s97 = sphi 0, %s95
      %s98 = sphi 0, %s97
      %s112 = sphi 0, %s98
      %s116 = sphi 0, %s116
      %s118 = sphi 0, %s116
      %s119 = sphi 0, %s118
      %s133 = sphi 0, %s119
      %s137 = sphi 0, %s137
      %s139 = sphi 0, %s137
      %s140 = sphi 0, %s139
      %s154 = sphi 0, %s140
      %s158 = sphi 0, %s158
      %s160 = sphi 0, %s158
      %s161 = sphi 0, %s160
      %s175 = sphi 0, %s161
      %s179 = sphi 0, %s179
      %s181 = sphi 0, %s179
      %s182 = sphi 0, %s181
      %s196 = sphi 0, %s182
      %s202 = sphi 0, %s204
      %s205 = sphi 0, %s202
      %s206 = sphi 0, %s205
      %s222 = sphi 0, %s206
      %s228 = sphi 0, %s230
      %s231 = sphi 0, %s228
      %s232 = sphi 0, %s231
      %s248 = sphi 0, %s232
      %s254 = sphi 0, %s256
      %s257 = sphi 0, %s254
      %s258 = sphi 0, %s257
      %s274 = sphi 0, %s258
      %s280 = sphi 0, %s282
      %s283 = sphi 0, %s280
      %s284 = sphi 0, %s283
      %s300 = sphi 0, %s284
      %s304 = sphi 0, %s304
      %s306 = sphi 0, %s304
      %s307 = sphi 0, %s306
      %s321 = sphi 0, %s307
      %s325 = sphi 0, %s325
      %s327 = sphi 0, %s325
      %s328 = sphi 0, %s327
      %s342 = sphi 0, %s328
      %s348 = sphi 0, %s350
      %s351 = sphi 0, %s348
      %s352 = sphi 0, %s351
      %s368 = sphi 0, %s352
      %s374 = sphi 0, %s376
      %s377 = sphi 0, %s374
      %s378 = sphi 0, %s377
      %s394 = sphi 0, %s378
      %s400 = sphi 0, %s402
      %s403 = sphi 0, %s400
      %s404 = sphi 0, %s403
      %s420 = sphi 0, %s404
      %s426 = sphi 0, %s428
      %s429 = sphi 0, %s426
      %s430 = sphi 0, %s429
      %s446 = sphi 0, %s430
      %s454 = sphi 0, %s456
      %s457 = sphi 0, %s454
      %s458 = sphi 0, %s457
      %s474 = sphi 0, %s458
    $region4: #{tpu_custom_call.1} parent=1 // loop_header_branch
      %29 = sbr.rel (%p27) target = $region8
    $region5: #{tpu_custom_call.1} parent=1 // loop_body
      %s31 = ssub.s32 %s26, 1
      %s32 = ssub.s32 %s26, 2
      %s39 = sadd.s32 1, %s34
      %p40 = scmp.ge.s32.totalorder %s39, 1
      %s41 = scalar_select %p40, 0, %s39
      %s42 = sadd.s32 1, %s33
      %s43 = scalar_select %p40, %s42, %s33
      %p44 = scmp.ge.s32.totalorder %s43, 2
      %s45 = scalar_select %p44, 0, %s43
      %s46 = ssub.s32 %s33, %s45
      %s47 = ssub.s32 %s34, %s41
      %s48 = sor.u32 %s46, %s47
      %p49 = scmp.eq.s32.totalorder %s48, 0
      %s51 = sadd.s32 %s50, 1
      %s52 = scalar_select %p49, %s50, %s51
      %p55 = pneg %p49
      %p56 = scmp.eq.s32.totalorder %s26, 1
      %p57 = por %p55, %p56
      %p58 = scmp.ne.s32.totalorder %s50, %s53
      %p59 = scmp.eq.s32.totalorder %s26, 0
      %p60 = por %p58, %p59
      %p61 = scmp.ne.s32.totalorder %s50, %s53
      %p62 = scmp.eq.s32.totalorder %s31, 1
      %p63 = por %p61, %p62
      %p64 = scmp.ne.s32.totalorder %s53, %s54
      %p65 = scmp.eq.s32.totalorder %s31, 0
      %p66 = por %p64, %p65
      %p67 = scmp.ne.s32.totalorder %s53, %s54
      %p68 = scmp.eq.s32.totalorder %s32, 1
      %p69 = por %p67, %p68
      %p71 = scmp.ne.s32.totalorder %s54, %s70
      %p72 = scmp.eq.s32.totalorder %s32, 0
      %p73 = por %p71, %p72
      %s75 = sadd.s32 %s74, 1
      %p78 = scmp.eq.s32.totalorder %s26, 1
      %p79 = scmp.ne.s32.totalorder %s74, %s76
      %p80 = scmp.eq.s32.totalorder %s26, 0
      %p81 = por %p79, %p80
      %p82 = scmp.ne.s32.totalorder %s74, %s76
      %p83 = scmp.eq.s32.totalorder %s31, 1
      %p84 = por %p82, %p83
      %p85 = scmp.ne.s32.totalorder %s76, %s77
      %p86 = scmp.eq.s32.totalorder %s31, 0
      %p87 = por %p85, %p86
      %p88 = scmp.ne.s32.totalorder %s76, %s77
      %p89 = scmp.eq.s32.totalorder %s32, 1
      %p90 = por %p88, %p89
      %p92 = scmp.ne.s32.totalorder %s77, %s91
      %p93 = scmp.eq.s32.totalorder %s32, 0
      %p94 = por %p92, %p93
      %s96 = sadd.s32 %s95, 1
      %p99 = scmp.eq.s32.totalorder %s26, 1
      %p100 = scmp.ne.s32.totalorder %s95, %s97
      %p101 = scmp.eq.s32.totalorder %s26, 0
      %p102 = por %p100, %p101
      %p103 = scmp.ne.s32.totalorder %s95, %s97
      %p104 = scmp.eq.s32.totalorder %s31, 1
      %p105 = por %p103, %p104
      %p106 = scmp.ne.s32.totalorder %s97, %s98
      %p107 = scmp.eq.s32.totalorder %s31, 0
      %p108 = por %p106, %p107
      %p109 = scmp.ne.s32.totalorder %s97, %s98
      %p110 = scmp.eq.s32.totalorder %s32, 1
      %p111 = por %p109, %p110
      %p113 = scmp.ne.s32.totalorder %s98, %s112
      %p114 = scmp.eq.s32.totalorder %s32, 0
      %p115 = por %p113, %p114
      %s117 = sadd.s32 %s116, 1
      %p120 = scmp.eq.s32.totalorder %s26, 1
      %p121 = scmp.ne.s32.totalorder %s116, %s118
      %p122 = scmp.eq.s32.totalorder %s26, 0
      %p123 = por %p121, %p122
      %p124 = scmp.ne.s32.totalorder %s116, %s118
      %p125 = scmp.eq.s32.totalorder %s31, 1
      %p126 = por %p124, %p125
      %p127 = scmp.ne.s32.totalorder %s118, %s119
      %p128 = scmp.eq.s32.totalorder %s31, 0
      %p129 = por %p127, %p128
      %p130 = scmp.ne.s32.totalorder %s118, %s119
      %p131 = scmp.eq.s32.totalorder %s32, 1
      %p132 = por %p130, %p131
      %p134 = scmp.ne.s32.totalorder %s119, %s133
      %p135 = scmp.eq.s32.totalorder %s32, 0
      %p136 = por %p134, %p135
      %s138 = sadd.s32 %s137, 1
      %p141 = scmp.eq.s32.totalorder %s26, 1
      %p142 = scmp.ne.s32.totalorder %s137, %s139
      %p143 = scmp.eq.s32.totalorder %s26, 0
      %p144 = por %p142, %p143
      %p145 = scmp.ne.s32.totalorder %s137, %s139
      %p146 = scmp.eq.s32.totalorder %s31, 1
      %p147 = por %p145, %p146
      %p148 = scmp.ne.s32.totalorder %s139, %s140
      %p149 = scmp.eq.s32.totalorder %s31, 0
      %p150 = por %p148, %p149
      %p151 = scmp.ne.s32.totalorder %s139, %s140
      %p152 = scmp.eq.s32.totalorder %s32, 1
      %p153 = por %p151, %p152
      %p155 = scmp.ne.s32.totalorder %s140, %s154
      %p156 = scmp.eq.s32.totalorder %s32, 0
      %p157 = por %p155, %p156
      %s159 = sadd.s32 %s158, 1
      %p162 = scmp.eq.s32.totalorder %s26, 1
      %p163 = scmp.ne.s32.totalorder %s158, %s160
      %p164 = scmp.eq.s32.totalorder %s26, 0
      %p165 = por %p163, %p164
      %p166 = scmp.ne.s32.totalorder %s158, %s160
      %p167 = scmp.eq.s32.totalorder %s31, 1
      %p168 = por %p166, %p167
      %p169 = scmp.ne.s32.totalorder %s160, %s161
      %p170 = scmp.eq.s32.totalorder %s31, 0
      %p171 = por %p169, %p170
      %p172 = scmp.ne.s32.totalorder %s160, %s161
      %p173 = scmp.eq.s32.totalorder %s32, 1
      %p174 = por %p172, %p173
      %p176 = scmp.ne.s32.totalorder %s161, %s175
      %p177 = scmp.eq.s32.totalorder %s32, 0
      %p178 = por %p176, %p177
      %s180 = sadd.s32 %s179, 1
      %p183 = scmp.eq.s32.totalorder %s26, 1
      %p184 = scmp.ne.s32.totalorder %s179, %s181
      %p185 = scmp.eq.s32.totalorder %s26, 0
      %p186 = por %p184, %p185
      %p187 = scmp.ne.s32.totalorder %s179, %s181
      %p188 = scmp.eq.s32.totalorder %s31, 1
      %p189 = por %p187, %p188
      %p190 = scmp.ne.s32.totalorder %s181, %s182
      %p191 = scmp.eq.s32.totalorder %s31, 0
      %p192 = por %p190, %p191
      %p193 = scmp.ne.s32.totalorder %s181, %s182
      %p194 = scmp.eq.s32.totalorder %s32, 1
      %p195 = por %p193, %p194
      %p197 = scmp.ne.s32.totalorder %s182, %s196
      %p198 = scmp.eq.s32.totalorder %s32, 0
      %p199 = por %p197, %p198
      %s200 = ssub.s32 %s34, %s41
      %p201 = scmp.eq.s32.totalorder %s200, 0
      %s203 = sadd.s32 %s202, 1
      %s204 = scalar_select %p201, %s202, %s203
      %p207 = pneg %p201
      %p208 = scmp.eq.s32.totalorder %s26, 1
      %p209 = por %p207, %p208
      %p210 = scmp.ne.s32.totalorder %s202, %s205
      %p211 = scmp.eq.s32.totalorder %s26, 0
      %p212 = por %p210, %p211
      %p213 = scmp.ne.s32.totalorder %s202, %s205
      %p214 = scmp.eq.s32.totalorder %s31, 1
      %p215 = por %p213, %p214
      %p216 = scmp.ne.s32.totalorder %s205, %s206
      %p217 = scmp.eq.s32.totalorder %s31, 0
      %p218 = por %p216, %p217
      %p219 = scmp.ne.s32.totalorder %s205, %s206
      %p220 = scmp.eq.s32.totalorder %s32, 1
      %p221 = por %p219, %p220
      %p223 = scmp.ne.s32.totalorder %s206, %s222
      %p224 = scmp.eq.s32.totalorder %s32, 0
      %p225 = por %p223, %p224
      %s226 = ssub.s32 %s34, %s41
      %p227 = scmp.eq.s32.totalorder %s226, 0
      %s229 = sadd.s32 %s228, 1
      %s230 = scalar_select %p227, %s228, %s229
      %p233 = pneg %p227
      %p234 = scmp.eq.s32.totalorder %s26, 1
      %p235 = por %p233, %p234
      %p236 = scmp.ne.s32.totalorder %s228, %s231
      %p237 = scmp.eq.s32.totalorder %s26, 0
      %p238 = por %p236, %p237
      %p239 = scmp.ne.s32.totalorder %s228, %s231
      %p240 = scmp.eq.s32.totalorder %s31, 1
      %p241 = por %p239, %p240
      %p242 = scmp.ne.s32.totalorder %s231, %s232
      %p243 = scmp.eq.s32.totalorder %s31, 0
      %p244 = por %p242, %p243
      %p245 = scmp.ne.s32.totalorder %s231, %s232
      %p246 = scmp.eq.s32.totalorder %s32, 1
      %p247 = por %p245, %p246
      %p249 = scmp.ne.s32.totalorder %s232, %s248
      %p250 = scmp.eq.s32.totalorder %s32, 0
      %p251 = por %p249, %p250
      %s252 = ssub.s32 %s34, %s41
      %p253 = scmp.eq.s32.totalorder %s252, 0
      %s255 = sadd.s32 %s254, 1
      %s256 = scalar_select %p253, %s254, %s255
      %p259 = pneg %p253
      %p260 = scmp.eq.s32.totalorder %s26, 1
      %p261 = por %p259, %p260
      %p262 = scmp.ne.s32.totalorder %s254, %s257
      %p263 = scmp.eq.s32.totalorder %s26, 0
      %p264 = por %p262, %p263
      %p265 = scmp.ne.s32.totalorder %s254, %s257
      %p266 = scmp.eq.s32.totalorder %s31, 1
      %p267 = por %p265, %p266
      %p268 = scmp.ne.s32.totalorder %s257, %s258
      %p269 = scmp.eq.s32.totalorder %s31, 0
      %p270 = por %p268, %p269
      %p271 = scmp.ne.s32.totalorder %s257, %s258
      %p272 = scmp.eq.s32.totalorder %s32, 1
      %p273 = por %p271, %p272
      %p275 = scmp.ne.s32.totalorder %s258, %s274
      %p276 = scmp.eq.s32.totalorder %s32, 0
      %p277 = por %p275, %p276
      %s278 = ssub.s32 %s34, %s41
      %p279 = scmp.eq.s32.totalorder %s278, 0
      %s281 = sadd.s32 %s280, 1
      %s282 = scalar_select %p279, %s280, %s281
      %p285 = pneg %p279
      %p286 = scmp.eq.s32.totalorder %s26, 1
      %p287 = por %p285, %p286
      %p288 = scmp.ne.s32.totalorder %s280, %s283
      %p289 = scmp.eq.s32.totalorder %s26, 0
      %p290 = por %p288, %p289
      %p291 = scmp.ne.s32.totalorder %s280, %s283
      %p292 = scmp.eq.s32.totalorder %s31, 1
      %p293 = por %p291, %p292
      %p294 = scmp.ne.s32.totalorder %s283, %s284
      %p295 = scmp.eq.s32.totalorder %s31, 0
      %p296 = por %p294, %p295
      %p297 = scmp.ne.s32.totalorder %s283, %s284
      %p298 = scmp.eq.s32.totalorder %s32, 1
      %p299 = por %p297, %p298
      %p301 = scmp.ne.s32.totalorder %s284, %s300
      %p302 = scmp.eq.s32.totalorder %s32, 0
      %p303 = por %p301, %p302
      %s305 = sadd.s32 %s304, 1
      %p308 = scmp.eq.s32.totalorder %s26, 1
      %p309 = scmp.ne.s32.totalorder %s304, %s306
      %p310 = scmp.eq.s32.totalorder %s26, 0
      %p311 = por %p309, %p310
      %p312 = scmp.ne.s32.totalorder %s304, %s306
      %p313 = scmp.eq.s32.totalorder %s31, 1
      %p314 = por %p312, %p313
      %p315 = scmp.ne.s32.totalorder %s306, %s307
      %p316 = scmp.eq.s32.totalorder %s31, 0
      %p317 = por %p315, %p316
      %p318 = scmp.ne.s32.totalorder %s306, %s307
      %p319 = scmp.eq.s32.totalorder %s32, 1
      %p320 = por %p318, %p319
      %p322 = scmp.ne.s32.totalorder %s307, %s321
      %p323 = scmp.eq.s32.totalorder %s32, 0
      %p324 = por %p322, %p323
      %s326 = sadd.s32 %s325, 1
      %p329 = scmp.eq.s32.totalorder %s26, 1
      %p330 = scmp.ne.s32.totalorder %s325, %s327
      %p331 = scmp.eq.s32.totalorder %s26, 0
      %p332 = por %p330, %p331
      %p333 = scmp.ne.s32.totalorder %s325, %s327
      %p334 = scmp.eq.s32.totalorder %s31, 1
      %p335 = por %p333, %p334
      %p336 = scmp.ne.s32.totalorder %s327, %s328
      %p337 = scmp.eq.s32.totalorder %s31, 0
      %p338 = por %p336, %p337
      %p339 = scmp.ne.s32.totalorder %s327, %s328
      %p340 = scmp.eq.s32.totalorder %s32, 1
      %p341 = por %p339, %p340
      %p343 = scmp.ne.s32.totalorder %s328, %s342
      %p344 = scmp.eq.s32.totalorder %s32, 0
      %p345 = por %p343, %p344
      %s346 = ssub.s32 %s34, %s41
      %p347 = scmp.eq.s32.totalorder %s346, 0
      %s349 = sadd.s32 %s348, 1
      %s350 = scalar_select %p347, %s348, %s349
      %p353 = pneg %p347
      %p354 = scmp.eq.s32.totalorder %s26, 1
      %p355 = por %p353, %p354
      %p356 = scmp.ne.s32.totalorder %s348, %s351
      %p357 = scmp.eq.s32.totalorder %s26, 0
      %p358 = por %p356, %p357
      %p359 = scmp.ne.s32.totalorder %s348, %s351
      %p360 = scmp.eq.s32.totalorder %s31, 1
      %p361 = por %p359, %p360
      %p362 = scmp.ne.s32.totalorder %s351, %s352
      %p363 = scmp.eq.s32.totalorder %s31, 0
      %p364 = por %p362, %p363
      %p365 = scmp.ne.s32.totalorder %s351, %s352
      %p366 = scmp.eq.s32.totalorder %s32, 1
      %p367 = por %p365, %p366
      %p369 = scmp.ne.s32.totalorder %s352, %s368
      %p370 = scmp.eq.s32.totalorder %s32, 0
      %p371 = por %p369, %p370
      %s372 = ssub.s32 %s34, %s41
      %p373 = scmp.eq.s32.totalorder %s372, 0
      %s375 = sadd.s32 %s374, 1
      %s376 = scalar_select %p373, %s374, %s375
      %p379 = pneg %p373
      %p380 = scmp.eq.s32.totalorder %s26, 1
      %p381 = por %p379, %p380
      %p382 = scmp.ne.s32.totalorder %s374, %s377
      %p383 = scmp.eq.s32.totalorder %s26, 0
      %p384 = por %p382, %p383
      %p385 = scmp.ne.s32.totalorder %s374, %s377
      %p386 = scmp.eq.s32.totalorder %s31, 1
      %p387 = por %p385, %p386
      %p388 = scmp.ne.s32.totalorder %s377, %s378
      %p389 = scmp.eq.s32.totalorder %s31, 0
      %p390 = por %p388, %p389
      %p391 = scmp.ne.s32.totalorder %s377, %s378
      %p392 = scmp.eq.s32.totalorder %s32, 1
      %p393 = por %p391, %p392
      %p395 = scmp.ne.s32.totalorder %s378, %s394
      %p396 = scmp.eq.s32.totalorder %s32, 0
      %p397 = por %p395, %p396
      %s398 = ssub.s32 %s34, %s41
      %p399 = scmp.eq.s32.totalorder %s398, 0
      %s401 = sadd.s32 %s400, 1
      %s402 = scalar_select %p399, %s400, %s401
      %p405 = pneg %p399
      %p406 = scmp.eq.s32.totalorder %s26, 1
      %p407 = por %p405, %p406
      %p408 = scmp.ne.s32.totalorder %s400, %s403
      %p409 = scmp.eq.s32.totalorder %s26, 0
      %p410 = por %p408, %p409
      %p411 = scmp.ne.s32.totalorder %s400, %s403
      %p412 = scmp.eq.s32.totalorder %s31, 1
      %p413 = por %p411, %p412
      %p414 = scmp.ne.s32.totalorder %s403, %s404
      %p415 = scmp.eq.s32.totalorder %s31, 0
      %p416 = por %p414, %p415
      %p417 = scmp.ne.s32.totalorder %s403, %s404
      %p418 = scmp.eq.s32.totalorder %s32, 1
      %p419 = por %p417, %p418
      %p421 = scmp.ne.s32.totalorder %s404, %s420
      %p422 = scmp.eq.s32.totalorder %s32, 0
      %p423 = por %p421, %p422
      %s424 = ssub.s32 %s34, %s41
      %p425 = scmp.eq.s32.totalorder %s424, 0
      %s427 = sadd.s32 %s426, 1
      %s428 = scalar_select %p425, %s426, %s427
      %p431 = pneg %p425
      %p432 = scmp.eq.s32.totalorder %s26, 1
      %p433 = por %p431, %p432
      %p434 = scmp.ne.s32.totalorder %s426, %s429
      %p435 = scmp.eq.s32.totalorder %s26, 0
      %p436 = por %p434, %p435
      %p437 = scmp.ne.s32.totalorder %s426, %s429
      %p438 = scmp.eq.s32.totalorder %s31, 1
      %p439 = por %p437, %p438
      %p440 = scmp.ne.s32.totalorder %s429, %s430
      %p441 = scmp.eq.s32.totalorder %s31, 0
      %p442 = por %p440, %p441
      %p443 = scmp.ne.s32.totalorder %s429, %s430
      %p444 = scmp.eq.s32.totalorder %s32, 1
      %p445 = por %p443, %p444
      %p447 = scmp.ne.s32.totalorder %s430, %s446
      %p448 = scmp.eq.s32.totalorder %s32, 0
      %p449 = por %p447, %p448
      %s450 = ssub.s32 %s33, %s45
      %s451 = ssub.s32 %s34, %s41
      %s452 = sor.u32 %s450, %s451
      %p453 = scmp.eq.s32.totalorder %s452, 0
      %s455 = sadd.s32 %s454, 1
      %s456 = scalar_select %p453, %s454, %s455
      %p459 = pneg %p453
      %p460 = scmp.eq.s32.totalorder %s26, 1
      %p461 = por %p459, %p460
      %p462 = scmp.ne.s32.totalorder %s454, %s457
      %p463 = scmp.eq.s32.totalorder %s26, 0
      %p464 = por %p462, %p463
      %p465 = scmp.ne.s32.totalorder %s454, %s457
      %p466 = scmp.eq.s32.totalorder %s31, 1
      %p467 = por %p465, %p466
      %p468 = scmp.ne.s32.totalorder %s457, %s458
      %p469 = scmp.eq.s32.totalorder %s31, 0
      %p470 = por %p468, %p469
      %p471 = scmp.ne.s32.totalorder %s457, %s458
      %p472 = scmp.eq.s32.totalorder %s32, 1
      %p473 = por %p471, %p472
      %p475 = scmp.ne.s32.totalorder %s458, %s474
      %p476 = scmp.eq.s32.totalorder %s32, 0
      %p477 = por %p475, %p476
      %p478 = scmp.le.s32.totalorder 1, %s26
      %p479 = scmp.lt.s32.totalorder %s26, 3
      %p480 = pnand %p478, %p479
      %p481 = pneg %p480
      // Predicated region
      $region9: #{tpu_custom_call.1} parent=5 // pred_check
        _
      $region10: #{tpu_custom_call.1} parent=5 // pred_check_branch
        %483 = sbr.rel (%p480) target = $region12
      $region11: #{tpu_custom_call.1} parent=5 // pred_region
        %s484 = ssub.s32 %s26, 1
        // Predicated region
        $region13: #{tpu_custom_call.1} parent=11 // pred_check
          %p485 = pneg %p87
        $region14: #{tpu_custom_call.1} parent=11 // pred_check_branch
          %487 = sbr.rel (%p485) target = $region16
        $region15: #{tpu_custom_call.1} parent=11 // pred_region
          _
        $region16: #{tpu_custom_call.1} parent=11 // pred_fallthru
          _
        // Predicated region
        $region17: #{tpu_custom_call.1} parent=11 // pred_check
          %p488 = pneg %p108
        $region18: #{tpu_custom_call.1} parent=11 // pred_check_branch
          %490 = sbr.rel (%p488) target = $region20
        $region19: #{tpu_custom_call.1} parent=11 // pred_region
          _
        $region20: #{tpu_custom_call.1} parent=11 // pred_fallthru
          _
        // Predicated region
        $region21: #{tpu_custom_call.1} parent=11 // pred_check
          %p491 = pneg %p129
        $region22: #{tpu_custom_call.1} parent=11 // pred_check_branch
          %493 = sbr.rel (%p491) target = $region24
        $region23: #{tpu_custom_call.1} parent=11 // pred_region
          _
        $region24: #{tpu_custom_call.1} parent=11 // pred_fallthru
          _
        // Predicated region
        $region25: #{tpu_custom_call.1} parent=11 // pred_check
          %p494 = pneg %p150
        $region26: #{tpu_custom_call.1} parent=11 // pred_check_branch
          %496 = sbr.rel (%p494) target = $region28
        $region27: #{tpu_custom_call.1} parent=11 // pred_region
          _
        $region28: #{tpu_custom_call.1} parent=11 // pred_fallthru
          _
        // Predicated region
        $region29: #{tpu_custom_call.1} parent=11 // pred_check
          %p497 = pneg %p171
        $region30: #{tpu_custom_call.1} parent=11 // pred_check_branch
          %499 = sbr.rel (%p497) target = $region32
        $region31: #{tpu_custom_call.1} parent=11 // pred_region
          _
        $region32: #{tpu_custom_call.1} parent=11 // pred_fallthru
          _
        // Predicated region
        $region33: #{tpu_custom_call.1} parent=11 // pred_check
          %p500 = pneg %p192
        $region34: #{tpu_custom_call.1} parent=11 // pred_check_branch
          %502 = sbr.rel (%p500) target = $region36
        $region35: #{tpu_custom_call.1} parent=11 // pred_region
          _
        $region36: #{tpu_custom_call.1} parent=11 // pred_fallthru
          _
        // Predicated region
        $region37: #{tpu_custom_call.1} parent=11 // pred_check
          %p503 = pneg %p218
        $region38: #{tpu_custom_call.1} parent=11 // pred_check_branch
          %505 = sbr.rel (%p503) target = $region40
        $region39: #{tpu_custom_call.1} parent=11 // pred_region
          %p506 = scmp.lt.s32.totalorder %s36, 0
          %s507 = scalar_select %p506, %s36, 0
          %s508 = smul.addr %s507, 4
          %s509 = scalar_lea.vmem %s7, %s508
        $region40: #{tpu_custom_call.1} parent=11 // pred_fallthru
          _
        // Predicated region
        $region41: #{tpu_custom_call.1} parent=11 // pred_check
          %p510 = pneg %p244
        $region42: #{tpu_custom_call.1} parent=11 // pred_check_branch
          %512 = sbr.rel (%p510) target = $region44
        $region43: #{tpu_custom_call.1} parent=11 // pred_region
          %p513 = scmp.lt.s32.totalorder %s36, 0
          %s514 = scalar_select %p513, %s36, 0
          %s515 = smul.addr %s514, 4
          %s516 = scalar_lea.vmem %s8, %s515
        $region44: #{tpu_custom_call.1} parent=11 // pred_fallthru
          _
        // Predicated region
        $region45: #{tpu_custom_call.1} parent=11 // pred_check
          %p517 = pneg %p270
        $region46: #{tpu_custom_call.1} parent=11 // pred_check_branch
          %519 = sbr.rel (%p517) target = $region48
        $region47: #{tpu_custom_call.1} parent=11 // pred_region
          %p520 = scmp.lt.s32.totalorder %s36, 0
          %s521 = scalar_select %p520, %s36, 0
          %s522 = smul.addr %s521, 4
          %s523 = scalar_lea.vmem %s9, %s522
        $region48: #{tpu_custom_call.1} parent=11 // pred_fallthru
          _
        // Predicated region
        $region49: #{tpu_custom_call.1} parent=11 // pred_check
          %p524 = pneg %p296
        $region50: #{tpu_custom_call.1} parent=11 // pred_check_branch
          %526 = sbr.rel (%p524) target = $region52
        $region51: #{tpu_custom_call.1} parent=11 // pred_region
          %p527 = scmp.lt.s32.totalorder %s36, 0
          %s528 = scalar_select %p527, %s36, 0
          %s529 = smul.addr %s528, 4
          %s530 = scalar_lea.vmem %s10, %s529
        $region52: #{tpu_custom_call.1} parent=11 // pred_fallthru
          _
        // Predicated region
        $region53: #{tpu_custom_call.1} parent=11 // pred_check
          %p531 = pneg %p317
        $region54: #{tpu_custom_call.1} parent=11 // pred_check_branch
          %533 = sbr.rel (%p531) target = $region56
        $region55: #{tpu_custom_call.1} parent=11 // pred_region
          _
        $region56: #{tpu_custom_call.1} parent=11 // pred_fallthru
          _
        // Predicated region
        $region57: #{tpu_custom_call.1} parent=11 // pred_check
          %p534 = pneg %p338
        $region58: #{tpu_custom_call.1} parent=11 // pred_check_branch
          %536 = sbr.rel (%p534) target = $region60
        $region59: #{tpu_custom_call.1} parent=11 // pred_region
          _
        $region60: #{tpu_custom_call.1} parent=11 // pred_fallthru
          _
        // Predicated region
        $region61: #{tpu_custom_call.1} parent=11 // pred_check
          %p537 = pneg %p364
        $region62: #{tpu_custom_call.1} parent=11 // pred_check_branch
          %539 = sbr.rel (%p537) target = $region64
        $region63: #{tpu_custom_call.1} parent=11 // pred_region
          %p540 = scmp.lt.s32.totalorder %s36, 0
          %s541 = scalar_select %p540, %s36, 0
          %s542 = smul.addr %s541, 4
          %s543 = scalar_lea.vmem %s13, %s542
        $region64: #{tpu_custom_call.1} parent=11 // pred_fallthru
          _
        // Predicated region
        $region65: #{tpu_custom_call.1} parent=11 // pred_check
          %p544 = pneg %p390
        $region66: #{tpu_custom_call.1} parent=11 // pred_check_branch
          %546 = sbr.rel (%p544) target = $region68
        $region67: #{tpu_custom_call.1} parent=11 // pred_region
          %p547 = scmp.lt.s32.totalorder %s36, 0
          %s548 = scalar_select %p547, %s36, 0
          %s549 = smul.addr %s548, 4
          %s550 = scalar_lea.vmem %s14, %s549
        $region68: #{tpu_custom_call.1} parent=11 // pred_fallthru
          _
        // Predicated region
        $region69: #{tpu_custom_call.1} parent=11 // pred_check
          %p551 = pneg %p416
        $region70: #{tpu_custom_call.1} parent=11 // pred_check_branch
          %553 = sbr.rel (%p551) target = $region72
        $region71: #{tpu_custom_call.1} parent=11 // pred_region
          %p554 = scmp.lt.s32.totalorder %s36, 0
          %s555 = scalar_select %p554, %s36, 0
          %s556 = smul.addr %s555, 4
          %s557 = scalar_lea.vmem %s15, %s556
        $region72: #{tpu_custom_call.1} parent=11 // pred_fallthru
          _
        // Predicated region
        $region73: #{tpu_custom_call.1} parent=11 // pred_check
          %p558 = pneg %p442
        $region74: #{tpu_custom_call.1} parent=11 // pred_check_branch
          %560 = sbr.rel (%p558) target = $region76
        $region75: #{tpu_custom_call.1} parent=11 // pred_region
          %p561 = scmp.lt.s32.totalorder %s36, 0
          %s562 = scalar_select %p561, %s36, 0
          %s563 = smul.addr %s562, 4
          %s564 = scalar_lea.vmem %s16, %s563
        $region76: #{tpu_custom_call.1} parent=11 // pred_fallthru
          _
      $region12: #{tpu_custom_call.1} parent=5 // pred_fallthru
        _
      %p565 = scmp.lt.s32.totalorder %s26, 2
      // Predicated region
      $region77: #{tpu_custom_call.1} parent=5 // pred_check
        %p566 = pneg %p565
      $region78: #{tpu_custom_call.1} parent=5 // pred_check_branch
        %568 = sbr.rel (%p566) target = $region80
      $region79: #{tpu_custom_call.1} parent=5 // pred_region
        // Predicated region
        $region81: #{tpu_custom_call.1} parent=79 // pred_check
          %p569 = pneg %p60
        $region82: #{tpu_custom_call.1} parent=79 // pred_check_branch
          %571 = sbr.rel (%p569) target = $region84
        $region83: #{tpu_custom_call.1} parent=79 // pred_region
          %p572 = scmp.lt.s32.totalorder %s33, 1
          %s573 = scalar_select %p572, %s33, 1
          %p574 = scmp.lt.s32.totalorder %s34, 0
          %s575 = scalar_select %p574, %s34, 0
          %s576 = smul.addr %s575, 2
          %s577 = smul.addr %s573, 2
          %s578 = sadd.s32 %s576, %s577
          %s579 = smul.addr %s578, 4
          %s580 = scalar_lea.vmem %s0, %s579
        $region84: #{tpu_custom_call.1} parent=79 // pred_fallthru
          _
      $region80: #{tpu_custom_call.1} parent=5 // pred_fallthru
        _
      %p581 = scmp.le.s32.totalorder 1, %s26
      %p582 = scmp.lt.s32.totalorder %s26, 3
      %p583 = pnand %p581, %p582
      %p584 = pneg %p583
      // Predicated region
      $region85: #{tpu_custom_call.1} parent=5 // pred_check
        _
      $region86: #{tpu_custom_call.1} parent=5 // pred_check_branch
        %586 = sbr.rel (%p583) target = $region88
      $region87: #{tpu_custom_call.1} parent=5 // pred_region
        %s587 = ssub.s32 %s26, 1
        %p588 = scmp.lt.s32.totalorder %s35, 1
        %s589 = scalar_select %p588, %s35, 1
        %p590 = scmp.lt.s32.totalorder %s36, 0
        %s591 = scalar_select %p590, %s36, 0
        %s592 = smul.addr %s591, 2
        %s593 = smul.addr %s589, 2
        %s594 = sadd.s32 %s592, %s593
        %s595 = smul.addr %s594, 4
        %s596 = scalar_lea.vmem %s0, %s595
        %p597 = pneg %p66
        %p598 = pneg %p63
        %p599 = pneg %p87
        %p600 = pneg %p84
        %p601 = pneg %p108
        %p602 = pneg %p105
        %p603 = pneg %p129
        %p604 = pneg %p126
        %p605 = pneg %p150
        %p606 = pneg %p147
        %p607 = pneg %p171
        %p608 = pneg %p168
        %p609 = pneg %p192
        %p610 = pneg %p189
        %p611 = scmp.lt.s32.totalorder %s36, 0
        %s612 = scalar_select %p611, %s36, 0
        %s613 = smul.addr %s612, 4
        %s614 = scalar_lea.vmem %s7, %s613
        %p615 = pneg %p218
        %p616 = pneg %p215
        %p617 = scmp.lt.s32.totalorder %s36, 0
        %s618 = scalar_select %p617, %s36, 0
        %s619 = smul.addr %s618, 4
        %s620 = scalar_lea.vmem %s8, %s619
        %p621 = pneg %p244
        %p622 = pneg %p241
        %p623 = scmp.lt.s32.totalorder %s36, 0
        %s624 = scalar_select %p623, %s36, 0
        %s625 = smul.addr %s624, 4
        %s626 = scalar_lea.vmem %s9, %s625
        %p627 = pneg %p270
        %p628 = pneg %p267
        %p629 = scmp.lt.s32.totalorder %s36, 0
        %s630 = scalar_select %p629, %s36, 0
        %s631 = smul.addr %s630, 4
        %s632 = scalar_lea.vmem %s10, %s631
        %p633 = pneg %p296
        %p634 = pneg %p293
        %p635 = pneg %p317
        %p636 = pneg %p314
        %p637 = pneg %p338
        %p638 = pneg %p335
        %p639 = scmp.lt.s32.totalorder %s36, 0
        %s640 = scalar_select %p639, %s36, 0
        %s641 = smul.addr %s640, 4
        %s642 = scalar_lea.vmem %s13, %s641
        %p643 = pneg %p364
        %p644 = pneg %p361
        %p645 = scmp.lt.s32.totalorder %s36, 0
        %s646 = scalar_select %p645, %s36, 0
        %s647 = smul.addr %s646, 4
        %s648 = scalar_lea.vmem %s14, %s647
        %p649 = pneg %p390
        %p650 = pneg %p387
        %p651 = scmp.lt.s32.totalorder %s36, 0
        %s652 = scalar_select %p651, %s36, 0
        %s653 = smul.addr %s652, 4
        %s654 = scalar_lea.vmem %s15, %s653
        %p655 = pneg %p416
        %p656 = pneg %p413
        %p657 = scmp.lt.s32.totalorder %s36, 0
        %s658 = scalar_select %p657, %s36, 0
        %s659 = smul.addr %s658, 4
        %s660 = scalar_lea.vmem %s16, %s659
        %p661 = pneg %p442
        %p662 = pneg %p439
        %p663 = pneg %p470
        %p664 = pneg %p467
        %s665 = sand.u32 %s457, 1
        %s666 = scalar_lea.sflag [#allocation3], %s665
        %s667 = sand.u32 %s457, 1
        %s668 = smul.addr %s667, 8
        %s669 = scalar_lea.vmem [#allocation2], %s668
        %p670 = scmp.lt.s32.totalorder %s35, 1
        %s671 = scalar_select %p670, %s35, 1
        %p672 = scmp.lt.s32.totalorder %s36, 0
        %s673 = scalar_select %p672, %s36, 0
        %s674 = smul.addr %s673, 2
        %s675 = smul.addr %s671, 2
        %s676 = sadd.s32 %s674, %s675
        %s677 = smul.addr %s676, 4
        %s678 = scalar_lea.vmem %s0, %s677
        %p679 = scmp.lt.s32.totalorder %s36, 0
        %s680 = scalar_select %p679, %s36, 0
        %s681 = smul.addr %s680, 4
        %s682 = scalar_lea.vmem %s7, %s681
        %p683 = scmp.lt.s32.totalorder %s36, 0
        %s684 = scalar_select %p683, %s36, 0
        %s685 = smul.addr %s684, 4
        %s686 = scalar_lea.vmem %s8, %s685
        %p687 = scmp.lt.s32.totalorder %s36, 0
        %s688 = scalar_select %p687, %s36, 0
        %s689 = smul.addr %s688, 4
        %s690 = scalar_lea.vmem %s9, %s689
        %p691 = scmp.lt.s32.totalorder %s36, 0
        %s692 = scalar_select %p691, %s36, 0
        %s693 = smul.addr %s692, 4
        %s694 = scalar_lea.vmem %s10, %s693
        %p695 = scmp.lt.s32.totalorder %s36, 0
        %s696 = scalar_select %p695, %s36, 0
        %s697 = smul.addr %s696, 4
        %s698 = scalar_lea.vmem %s13, %s697
        %p699 = scmp.lt.s32.totalorder %s36, 0
        %s700 = scalar_select %p699, %s36, 0
        %s701 = smul.addr %s700, 4
        %s702 = scalar_lea.vmem %s14, %s701
        %p703 = scmp.lt.s32.totalorder %s36, 0
        %s704 = scalar_select %p703, %s36, 0
        %s705 = smul.addr %s704, 4
        %s706 = scalar_lea.vmem %s15, %s705
        %p707 = scmp.lt.s32.totalorder %s36, 0
        %s708 = scalar_select %p707, %s36, 0
        %s709 = smul.addr %s708, 4
        %s710 = scalar_lea.vmem %s16, %s709
        %v711 = vld [vmem:[%s678] sm:$0xff]
        %v712 = vld [vmem:[%s1] sm:$0xff]
        %v713 = vld [vmem:[%s1 + $0x8] sm:$0xff]
        %v714 = vld [vmem:[%s1 + $0x10] sm:$0xff]
        %v715 = vld [vmem:[%s1 + $0x18] sm:$0xff]
        %v716 = vld [vmem:[%s1 + $0x20] sm:$0xff]
        %v717 = vld [vmem:[%s1 + $0x28] sm:$0xff]
        %v718 = vld [vmem:[%s1 + $0x30] sm:$0xff]
        %v719 = vld [vmem:[%s1 + $0x38] sm:$0xff]
        %v720 = vld [vmem:[%s1 + $0x40] sm:$0xff]
        %v721 = vld [vmem:[%s1 + $0x48] sm:$0xff]
        %v722 = vld [vmem:[%s1 + $0x50] sm:$0xff]
        %v723 = vld [vmem:[%s1 + $0x58] sm:$0xff]
        %v724 = vld [vmem:[%s1 + $0x60] sm:$0xff]
        %v725 = vld [vmem:[%s1 + $0x68] sm:$0xff]
        %v726 = vld [vmem:[%s1 + $0x70] sm:$0xff]
        %v727 = vld [vmem:[%s1 + $0x78] sm:$0xff]
        %v728 = vld [vmem:[%s1 + $0x80] sm:$0xff]
        %v729 = vld [vmem:[%s1 + $0x88] sm:$0xff]
        %v730 = vld [vmem:[%s1 + $0x90] sm:$0xff]
        %v731 = vld [vmem:[%s1 + $0x98] sm:$0xff]
        %v732 = vld [vmem:[%s1 + $0xa0] sm:$0xff]
        %v733 = vld [vmem:[%s1 + $0xa8] sm:$0xff]
        %v734 = vld [vmem:[%s1 + $0xb0] sm:$0xff]
        %v735 = vld [vmem:[%s1 + $0xb8] sm:$0xff]
        %v736 = vld [vmem:[%s1 + $0xc0] sm:$0xff]
        %v737 = vld [vmem:[%s1 + $0xc8] sm:$0xff]
        %v738 = vld [vmem:[%s1 + $0xd0] sm:$0xff]
        %v739 = vld [vmem:[%s1 + $0xd8] sm:$0xff]
        %v740 = vld [vmem:[%s1 + $0xe0] sm:$0xff]
        %v741 = vld [vmem:[%s1 + $0xe8] sm:$0xff]
        %v742 = vld [vmem:[%s1 + $0xf0] sm:$0xff]
        %v743 = vld [vmem:[%s1 + $0xf8] sm:$0xff]
        %v745 = vcombine.high %v711, %v711
        %747 = vmatprep.subr.mxu0 0.0
        %748 = vmatpush1.msra.mxu0 %v712
        %749 = vmatprep.subr.mxu0 0.0
        %750 = vmatpush1.msra.mxu0 %v713
        %751 = vmatprep.subr.mxu0 0.0
        %752 = vmatpush1.msra.mxu0 %v714
        %753 = vmatprep.subr.mxu0 0.0
        %754 = vmatpush1.msra.mxu0 %v715
        %755 = vmatprep.subr.mxu0 0.0
        %756 = vmatpush1.msra.mxu0 %v716
        %757 = vmatprep.subr.mxu0 0.0
        %758 = vmatpush1.msra.mxu0 %v717
        %759 = vmatprep.subr.mxu0 0.0
        %760 = vmatpush1.msra.mxu0 %v718
        %761 = vmatprep.subr.mxu0 0.0
        %762 = vmatpush1.msra.mxu0 %v719
        %763 = vmatprep.subr.mxu0 0.0
        %764 = vmatpush1.msra.mxu0 %v720
        %765 = vmatprep.subr.mxu0 0.0
        %766 = vmatpush1.msra.mxu0 %v721
        %767 = vmatprep.subr.mxu0 0.0
        %768 = vmatpush1.msra.mxu0 %v722
        %769 = vmatprep.subr.mxu0 0.0
        %770 = vmatpush1.msra.mxu0 %v723
        %771 = vmatprep.subr.mxu0 0.0
        %772 = vmatpush1.msra.mxu0 %v724
        %773 = vmatprep.subr.mxu0 0.0
        %774 = vmatpush1.msra.mxu0 %v725
        %775 = vmatprep.subr.mxu0 0.0
        %776 = vmatpush1.msra.mxu0 %v726
        %777 = vmatprep.subr.mxu0 0.0
        %778 = vmatpush1.msra.mxu0 %v727
        %779 = vmatprep.subr.mxu0 0.0
        %780 = vmatpush1.msra.mxu0 %v728
        %781 = vmatprep.subr.mxu0 0.0
        %782 = vmatpush1.msra.mxu0 %v729
        %783 = vmatprep.subr.mxu0 0.0
        %784 = vmatpush1.msra.mxu0 %v730
        %785 = vmatprep.subr.mxu0 0.0
        %786 = vmatpush1.msra.mxu0 %v731
        %787 = vmatprep.subr.mxu0 0.0
        %788 = vmatpush1.msra.mxu0 %v732
        %789 = vmatprep.subr.mxu0 0.0
        %790 = vmatpush1.msra.mxu0 %v733
        %791 = vmatprep.subr.mxu0 0.0
        %792 = vmatpush1.msra.mxu0 %v734
        %793 = vmatprep.subr.mxu0 0.0
        %794 = vmatpush1.msra.mxu0 %v735
        %795 = vmatprep.subr.mxu0 0.0
        %796 = vmatpush1.msra.mxu0 %v736
        %797 = vmatprep.subr.mxu0 0.0
        %798 = vmatpush1.msra.mxu0 %v737
        %799 = vmatprep.subr.mxu0 0.0
        %800 = vmatpush1.msra.mxu0 %v738
        %801 = vmatprep.subr.mxu0 0.0
        %802 = vmatpush1.msra.mxu0 %v739
        %803 = vmatprep.subr.mxu0 0.0
        %804 = vmatpush1.msra.mxu0 %v740
        %805 = vmatprep.subr.mxu0 0.0
        %806 = vmatpush1.msra.mxu0 %v741
        %807 = vmatprep.subr.mxu0 0.0
        %808 = vmatpush1.msra.mxu0 %v742
        %809 = vmatprep.subr.mxu0 0.0
        %810 = vmatpush1.msra.mxu0 %v743
        %811 = vmatprep.mubr.f32.mxu0 %v745
        %812 = vmatmul.mubr.f32.gmra.mrb[0].mxu0 %v711
        %v813 = vpop.f32.mrb[0].mxu0
        %v814 = vadd.f32 0.0, %v813
        %v815 = vpop.f32.mrb[0].mxu0
        %816 = vdwg.mxu0
        %v817 = vld [vmem:[%s2] sm:$0xff]
        %v818 = vld [vmem:[%s2 + $0x8] sm:$0xff]
        %v819 = vld [vmem:[%s2 + $0x10] sm:$0xff]
        %v820 = vld [vmem:[%s2 + $0x18] sm:$0xff]
        %v821 = vld [vmem:[%s2 + $0x20] sm:$0xff]
        %v822 = vld [vmem:[%s2 + $0x28] sm:$0xff]
        %v823 = vld [vmem:[%s2 + $0x30] sm:$0xff]
        %v824 = vld [vmem:[%s2 + $0x38] sm:$0xff]
        %v825 = vld [vmem:[%s2 + $0x40] sm:$0xff]
        %v826 = vld [vmem:[%s2 + $0x48] sm:$0xff]
        %v827 = vld [vmem:[%s2 + $0x50] sm:$0xff]
        %v828 = vld [vmem:[%s2 + $0x58] sm:$0xff]
        %v829 = vld [vmem:[%s2 + $0x60] sm:$0xff]
        %v830 = vld [vmem:[%s2 + $0x68] sm:$0xff]
        %v831 = vld [vmem:[%s2 + $0x70] sm:$0xff]
        %v832 = vld [vmem:[%s2 + $0x78] sm:$0xff]
        %v833 = vld [vmem:[%s2 + $0x80] sm:$0xff]
        %v834 = vld [vmem:[%s2 + $0x88] sm:$0xff]
        %v835 = vld [vmem:[%s2 + $0x90] sm:$0xff]
        %v836 = vld [vmem:[%s2 + $0x98] sm:$0xff]
        %v837 = vld [vmem:[%s2 + $0xa0] sm:$0xff]
        %v838 = vld [vmem:[%s2 + $0xa8] sm:$0xff]
        %v839 = vld [vmem:[%s2 + $0xb0] sm:$0xff]
        %v840 = vld [vmem:[%s2 + $0xb8] sm:$0xff]
        %v841 = vld [vmem:[%s2 + $0xc0] sm:$0xff]
        %v842 = vld [vmem:[%s2 + $0xc8] sm:$0xff]
        %v843 = vld [vmem:[%s2 + $0xd0] sm:$0xff]
        %v844 = vld [vmem:[%s2 + $0xd8] sm:$0xff]
        %v845 = vld [vmem:[%s2 + $0xe0] sm:$0xff]
        %v846 = vld [vmem:[%s2 + $0xe8] sm:$0xff]
        %v847 = vld [vmem:[%s2 + $0xf0] sm:$0xff]
        %v848 = vld [vmem:[%s2 + $0xf8] sm:$0xff]
        %849 = vmatprep.subr.mxu0 0.0
        %850 = vmatpush1.msra.mxu0 %v817
        %851 = vmatprep.subr.mxu0 0.0
        %852 = vmatpush1.msra.mxu0 %v818
        %853 = vmatprep.subr.mxu0 0.0
        %854 = vmatpush1.msra.mxu0 %v819
        %855 = vmatprep.subr.mxu0 0.0
        %856 = vmatpush1.msra.mxu0 %v820
        %857 = vmatprep.subr.mxu0 0.0
        %858 = vmatpush1.msra.mxu0 %v821
        %859 = vmatprep.subr.mxu0 0.0
        %860 = vmatpush1.msra.mxu0 %v822
        %861 = vmatprep.subr.mxu0 0.0
        %862 = vmatpush1.msra.mxu0 %v823
        %863 = vmatprep.subr.mxu0 0.0
        %864 = vmatpush1.msra.mxu0 %v824
        %865 = vmatprep.subr.mxu0 0.0
        %866 = vmatpush1.msra.mxu0 %v825
        %867 = vmatprep.subr.mxu0 0.0
        %868 = vmatpush1.msra.mxu0 %v826
        %869 = vmatprep.subr.mxu0 0.0
        %870 = vmatpush1.msra.mxu0 %v827
        %871 = vmatprep.subr.mxu0 0.0
        %872 = vmatpush1.msra.mxu0 %v828
        %873 = vmatprep.subr.mxu0 0.0
        %874 = vmatpush1.msra.mxu0 %v829
        %875 = vmatprep.subr.mxu0 0.0
        %876 = vmatpush1.msra.mxu0 %v830
        %877 = vmatprep.subr.mxu0 0.0
        %878 = vmatpush1.msra.mxu0 %v831
        %879 = vmatprep.subr.mxu0 0.0
        %880 = vmatpush1.msra.mxu0 %v832
        %881 = vmatprep.subr.mxu0 0.0
        %882 = vmatpush1.msra.mxu0 %v833
        %883 = vmatprep.subr.mxu0 0.0
        %884 = vmatpush1.msra.mxu0 %v834
        %885 = vmatprep.subr.mxu0 0.0
        %886 = vmatpush1.msra.mxu0 %v835
        %887 = vmatprep.subr.mxu0 0.0
        %888 = vmatpush1.msra.mxu0 %v836
        %889 = vmatprep.subr.mxu0 0.0
        %890 = vmatpush1.msra.mxu0 %v837
        %891 = vmatprep.subr.mxu0 0.0
        %892 = vmatpush1.msra.mxu0 %v838
        %893 = vmatprep.subr.mxu0 0.0
        %894 = vmatpush1.msra.mxu0 %v839
        %895 = vmatprep.subr.mxu0 0.0
        %896 = vmatpush1.msra.mxu0 %v840
        %897 = vmatprep.subr.mxu0 0.0
        %898 = vmatpush1.msra.mxu0 %v841
        %899 = vmatprep.subr.mxu0 0.0
        %900 = vmatpush1.msra.mxu0 %v842
        %901 = vmatprep.subr.mxu0 0.0
        %902 = vmatpush1.msra.mxu0 %v843
        %903 = vmatprep.subr.mxu0 0.0
        %904 = vmatpush1.msra.mxu0 %v844
        %905 = vmatprep.subr.mxu0 0.0
        %906 = vmatpush1.msra.mxu0 %v845
        %907 = vmatprep.subr.mxu0 0.0
        %908 = vmatpush1.msra.mxu0 %v846
        %909 = vmatprep.subr.mxu0 0.0
        %910 = vmatpush1.msra.mxu0 %v847
        %911 = vmatprep.subr.mxu0 0.0
        %912 = vmatpush1.msra.mxu0 %v848
        %913 = vmatprep.mubr.f32.mxu0 %v745
        %914 = vmatmul.mubr.f32.gmra.mrb[0].mxu0 %v711
        %v915 = vpop.f32.mrb[0].mxu0
        %v916 = vadd.f32 0.0, %v915
        %v917 = vpop.f32.mrb[0].mxu0
        %918 = vdwg.mxu0
        %v919 = vld [vmem:[%s5] sm:$0xff]
        %v920 = vld [vmem:[%s5 + $0x8] sm:$0xff]
        %v921 = vld [vmem:[%s6] sm:$0xff]
        %v922 = vld [vmem:[%s682] sm:$0xf]
        %v923 = vld [vmem:[%s686] sm:$0xf]
        %v924 = vld [vmem:[%s690] sm:$0xf]
        %v925 = vld [vmem:[%s694] sm:$0xf]
        %vm926 = vcmask 130048
        %v928 = vsel %vm926, %v814, 0
        %930 = vmatprep.subr.mxu0 0.0
        %931 = vmatpush1.msra.mxu0 %v919
        %932 = vmatprep.subr.mxu0 0.0
        %933 = vmatpush1.msra.mxu0 %v920
        %934 = vmatprep.subr.mxu0 0.0
        %935 = vmatpush1.msra.mxu0 0.0
        %936 = vmatprep.subr.mxu0 0.0
        %937 = vmatpush1.msra.mxu0 0.0
        %938 = vmatprep.subr.mxu0 0.0
        %939 = vmatpush1.msra.mxu0 0.0
        %940 = vmatprep.subr.mxu0 0.0
        %941 = vmatpush1.msra.mxu0 0.0
        %942 = vmatprep.subr.mxu0 0.0
        %943 = vmatpush1.msra.mxu0 0.0
        %944 = vmatprep.subr.mxu0 0.0
        %945 = vmatpush1.msra.mxu0 0.0
        %946 = vmatprep.subr.mxu0 0.0
        %947 = vmatpush1.msra.mxu0 0.0
        %948 = vmatprep.subr.mxu0 0.0
        %949 = vmatpush1.msra.mxu0 0.0
        %950 = vmatprep.subr.mxu0 0.0
        %951 = vmatpush1.msra.mxu0 0.0
        %952 = vmatprep.subr.mxu0 0.0
        %953 = vmatpush1.msra.mxu0 0.0
        %954 = vmatprep.subr.mxu0 0.0
        %955 = vmatpush1.msra.mxu0 0.0
        %956 = vmatprep.subr.mxu0 0.0
        %957 = vmatpush1.msra.mxu0 0.0
        %958 = vmatprep.subr.mxu0 0.0
        %959 = vmatpush1.msra.mxu0 0.0
        %960 = vmatprep.subr.mxu0 0.0
        %961 = vmatpush1.msra.mxu0 0.0
        %962 = vmatprep.subr.mxu0 0.0
        %963 = vmatpush1.msra.mxu0 0.0
        %964 = vmatprep.subr.mxu0 0.0
        %965 = vmatpush1.msra.mxu0 0.0
        %966 = vmatprep.subr.mxu0 0.0
        %967 = vmatpush1.msra.mxu0 0.0
        %968 = vmatprep.subr.mxu0 0.0
        %969 = vmatpush1.msra.mxu0 0.0
        %970 = vmatprep.subr.mxu0 0.0
        %971 = vmatpush1.msra.mxu0 0.0
        %972 = vmatprep.subr.mxu0 0.0
        %973 = vmatpush1.msra.mxu0 0.0
        %974 = vmatprep.subr.mxu0 0.0
        %975 = vmatpush1.msra.mxu0 0.0
        %976 = vmatprep.subr.mxu0 0.0
        %977 = vmatpush1.msra.mxu0 0.0
        %978 = vmatprep.subr.mxu0 0.0
        %979 = vmatpush1.msra.mxu0 0.0
        %980 = vmatprep.subr.mxu0 0.0
        %981 = vmatpush1.msra.mxu0 0.0
        %982 = vmatprep.subr.mxu0 0.0
        %983 = vmatpush1.msra.mxu0 0.0
        %984 = vmatprep.subr.mxu0 0.0
        %985 = vmatpush1.msra.mxu0 0.0
        %986 = vmatprep.subr.mxu0 0.0
        %987 = vmatpush1.msra.mxu0 0.0
        %988 = vmatprep.subr.mxu0 0.0
        %989 = vmatpush1.msra.mxu0 0.0
        %990 = vmatprep.subr.mxu0 0.0
        %991 = vmatpush1.msra.mxu0 0.0
        %992 = vmatprep.subr.mxu0 0.0
        %993 = vmatpush1.msra.mxu0 0.0
        %994 = vmatprep.mubr.f32.mxu0 0.0
        %995 = vmatmul.mubr.f32.gmra.mrb[0].mxu0 %v928
        %v996 = vpop.f32.mrb[0].mxu0
        %v997 = vadd.f32 0.0, %v996
        %v998 = vpop.f32.mrb[0].mxu0
        %999 = vdwg.mxu0
        %1001 = vset.pattern.permute.xlu0 0
        %1002 = vperm.xlu0 %1001, %v922
        %v1003 = vpop.permute.xlu0 %1002
        %v1005 = vmul.f32 %v997, %v1003
        %v1006 = vadd.f32 %v1005, %v923
        %v1007 = vmax.f32 %v1006, 0.0
        %1009 = vset.pattern.permute.xlu0 0
        %1010 = vperm.xlu0 %1009, %v924
        %v1011 = vpop.permute.xlu0 %1010
        %v1013 = vmul.f32 %v1007, %v1011
        %vm1014 = vcmask 64512
        %v1016 = vsel %vm1014, %v1013, 0
        %1018 = vmatprep.subr.mxu0 0.0
        %1019 = vmatpush1.msra.mxu0 %v921
        %1020 = vmatprep.subr.mxu0 0.0
        %1021 = vmatpush1.msra.mxu0 0.0
        %1022 = vmatprep.subr.mxu0 0.0
        %1023 = vmatpush1.msra.mxu0 0.0
        %1024 = vmatprep.subr.mxu0 0.0
        %1025 = vmatpush1.msra.mxu0 0.0
        %1026 = vmatprep.subr.mxu0 0.0
        %1027 = vmatpush1.msra.mxu0 0.0
        %1028 = vmatprep.subr.mxu0 0.0
        %1029 = vmatpush1.msra.mxu0 0.0
        %1030 = vmatprep.subr.mxu0 0.0
        %1031 = vmatpush1.msra.mxu0 0.0
        %1032 = vmatprep.subr.mxu0 0.0
        %1033 = vmatpush1.msra.mxu0 0.0
        %1034 = vmatprep.subr.mxu0 0.0
        %1035 = vmatpush1.msra.mxu0 0.0
        %1036 = vmatprep.subr.mxu0 0.0
        %1037 = vmatpush1.msra.mxu0 0.0
        %1038 = vmatprep.subr.mxu0 0.0
        %1039 = vmatpush1.msra.mxu0 0.0
        %1040 = vmatprep.subr.mxu0 0.0
        %1041 = vmatpush1.msra.mxu0 0.0
        %1042 = vmatprep.subr.mxu0 0.0
        %1043 = vmatpush1.msra.mxu0 0.0
        %1044 = vmatprep.subr.mxu0 0.0
        %1045 = vmatpush1.msra.mxu0 0.0
        %1046 = vmatprep.subr.mxu0 0.0
        %1047 = vmatpush1.msra.mxu0 0.0
        %1048 = vmatprep.subr.mxu0 0.0
        %1049 = vmatpush1.msra.mxu0 0.0
        %1050 = vmatprep.subr.mxu0 0.0
        %1051 = vmatpush1.msra.mxu0 0.0
        %1052 = vmatprep.subr.mxu0 0.0
        %1053 = vmatpush1.msra.mxu0 0.0
        %1054 = vmatprep.subr.mxu0 0.0
        %1055 = vmatpush1.msra.mxu0 0.0
        %1056 = vmatprep.subr.mxu0 0.0
        %1057 = vmatpush1.msra.mxu0 0.0
        %1058 = vmatprep.subr.mxu0 0.0
        %1059 = vmatpush1.msra.mxu0 0.0
        %1060 = vmatprep.subr.mxu0 0.0
        %1061 = vmatpush1.msra.mxu0 0.0
        %1062 = vmatprep.subr.mxu0 0.0
        %1063 = vmatpush1.msra.mxu0 0.0
        %1064 = vmatprep.subr.mxu0 0.0
        %1065 = vmatpush1.msra.mxu0 0.0
        %1066 = vmatprep.subr.mxu0 0.0
        %1067 = vmatpush1.msra.mxu0 0.0
        %1068 = vmatprep.subr.mxu0 0.0
        %1069 = vmatpush1.msra.mxu0 0.0
        %1070 = vmatprep.subr.mxu0 0.0
        %1071 = vmatpush1.msra.mxu0 0.0
        %1072 = vmatprep.subr.mxu0 0.0
        %1073 = vmatpush1.msra.mxu0 0.0
        %1074 = vmatprep.subr.mxu0 0.0
        %1075 = vmatpush1.msra.mxu0 0.0
        %1076 = vmatprep.subr.mxu0 0.0
        %1077 = vmatpush1.msra.mxu0 0.0
        %1078 = vmatprep.subr.mxu0 0.0
        %1079 = vmatpush1.msra.mxu0 0.0
        %1080 = vmatprep.subr.mxu0 0.0
        %1081 = vmatpush1.msra.mxu0 0.0
        %1082 = vmatprep.mubr.f32.mxu0 0.0
        %1083 = vmatmul.mubr.f32.gmra.mrb[0].mxu0 %v1016
        %v1084 = vpop.f32.mrb[0].mxu0
        %v1085 = vadd.f32 %v925, %v1084
        %v1086 = vpop.f32.mrb[0].mxu0
        %1087 = vdwg.mxu0
        %v1088 = vxor.u32 %v1085, 2147483648
        %v1089 = vmul.f32 %v1088, 1.442695
        %v1090 = vpow.pop %v1089
        %v1091 = vadd.f32 %v1090, 1.0
        %v1092 = vrcp.pop %v1091
        %v1093 = vmul.f32 1.0, %v1092
        %v1094 = vld [vmem:[%s11] sm:$0xff]
        %v1095 = vld [vmem:[%s11 + $0x8] sm:$0xff]
        %v1096 = vld [vmem:[%s12] sm:$0xff]
        %v1097 = vld [vmem:[%s698] sm:$0xf]
        %v1098 = vld [vmem:[%s702] sm:$0xf]
        %v1099 = vld [vmem:[%s706] sm:$0xf]
        %v1100 = vld [vmem:[%s710] sm:$0xf]
        %v1102 = vsel %vm926, %v916, 0
        %1104 = vmatprep.subr.mxu0 0.0
        %1105 = vmatpush1.msra.mxu0 %v1094
        %1106 = vmatprep.subr.mxu0 0.0
        %1107 = vmatpush1.msra.mxu0 %v1095
        %1108 = vmatprep.subr.mxu0 0.0
        %1109 = vmatpush1.msra.mxu0 0.0
        %1110 = vmatprep.subr.mxu0 0.0
        %1111 = vmatpush1.msra.mxu0 0.0
        %1112 = vmatprep.subr.mxu0 0.0
        %1113 = vmatpush1.msra.mxu0 0.0
        %1114 = vmatprep.subr.mxu0 0.0
        %1115 = vmatpush1.msra.mxu0 0.0
        %1116 = vmatprep.subr.mxu0 0.0
        %1117 = vmatpush1.msra.mxu0 0.0
        %1118 = vmatprep.subr.mxu0 0.0
        %1119 = vmatpush1.msra.mxu0 0.0
        %1120 = vmatprep.subr.mxu0 0.0
        %1121 = vmatpush1.msra.mxu0 0.0
        %1122 = vmatprep.subr.mxu0 0.0
        %1123 = vmatpush1.msra.mxu0 0.0
        %1124 = vmatprep.subr.mxu0 0.0
        %1125 = vmatpush1.msra.mxu0 0.0
        %1126 = vmatprep.subr.mxu0 0.0
        %1127 = vmatpush1.msra.mxu0 0.0
        %1128 = vmatprep.subr.mxu0 0.0
        %1129 = vmatpush1.msra.mxu0 0.0
        %1130 = vmatprep.subr.mxu0 0.0
        %1131 = vmatpush1.msra.mxu0 0.0
        %1132 = vmatprep.subr.mxu0 0.0
        %1133 = vmatpush1.msra.mxu0 0.0
        %1134 = vmatprep.subr.mxu0 0.0
        %1135 = vmatpush1.msra.mxu0 0.0
        %1136 = vmatprep.subr.mxu0 0.0
        %1137 = vmatpush1.msra.mxu0 0.0
        %1138 = vmatprep.subr.mxu0 0.0
        %1139 = vmatpush1.msra.mxu0 0.0
        %1140 = vmatprep.subr.mxu0 0.0
        %1141 = vmatpush1.msra.mxu0 0.0
        %1142 = vmatprep.subr.mxu0 0.0
        %1143 = vmatpush1.msra.mxu0 0.0
        %1144 = vmatprep.subr.mxu0 0.0
        %1145 = vmatpush1.msra.mxu0 0.0
        %1146 = vmatprep.subr.mxu0 0.0
        %1147 = vmatpush1.msra.mxu0 0.0
        %1148 = vmatprep.subr.mxu0 0.0
        %1149 = vmatpush1.msra.mxu0 0.0
        %1150 = vmatprep.subr.mxu0 0.0
        %1151 = vmatpush1.msra.mxu0 0.0
        %1152 = vmatprep.subr.mxu0 0.0
        %1153 = vmatpush1.msra.mxu0 0.0
        %1154 = vmatprep.subr.mxu0 0.0
        %1155 = vmatpush1.msra.mxu0 0.0
        %1156 = vmatprep.subr.mxu0 0.0
        %1157 = vmatpush1.msra.mxu0 0.0
        %1158 = vmatprep.subr.mxu0 0.0
        %1159 = vmatpush1.msra.mxu0 0.0
        %1160 = vmatprep.subr.mxu0 0.0
        %1161 = vmatpush1.msra.mxu0 0.0
        %1162 = vmatprep.subr.mxu0 0.0
        %1163 = vmatpush1.msra.mxu0 0.0
        %1164 = vmatprep.subr.mxu0 0.0
        %1165 = vmatpush1.msra.mxu0 0.0
        %1166 = vmatprep.subr.mxu0 0.0
        %1167 = vmatpush1.msra.mxu0 0.0
        %1168 = vmatprep.mubr.f32.mxu0 0.0
        %1169 = vmatmul.mubr.f32.gmra.mrb[0].mxu0 %v1102
        %v1170 = vpop.f32.mrb[0].mxu0
        %v1171 = vadd.f32 0.0, %v1170
        %v1172 = vpop.f32.mrb[0].mxu0
        %1173 = vdwg.mxu0
        %1175 = vset.pattern.permute.xlu0 0
        %1176 = vperm.xlu0 %1175, %v1097
        %v1177 = vpop.permute.xlu0 %1176
        %v1179 = vmul.f32 %v1171, %v1177
        %v1180 = vadd.f32 %v1179, %v1098
        %v1181 = vmax.f32 %v1180, 0.0
        %1183 = vset.pattern.permute.xlu0 0
        %1184 = vperm.xlu0 %1183, %v1099
        %v1185 = vpop.permute.xlu0 %1184
        %v1187 = vmul.f32 %v1181, %v1185
        %v1189 = vsel %vm1014, %v1187, 0
        %1191 = vmatprep.subr.mxu0 0.0
        %1192 = vmatpush1.msra.mxu0 %v1096
        %1193 = vmatprep.subr.mxu0 0.0
        %1194 = vmatpush1.msra.mxu0 0.0
        %1195 = vmatprep.subr.mxu0 0.0
        %1196 = vmatpush1.msra.mxu0 0.0
        %1197 = vmatprep.subr.mxu0 0.0
        %1198 = vmatpush1.msra.mxu0 0.0
        %1199 = vmatprep.subr.mxu0 0.0
        %1200 = vmatpush1.msra.mxu0 0.0
        %1201 = vmatprep.subr.mxu0 0.0
        %1202 = vmatpush1.msra.mxu0 0.0
        %1203 = vmatprep.subr.mxu0 0.0
        %1204 = vmatpush1.msra.mxu0 0.0
        %1205 = vmatprep.subr.mxu0 0.0
        %1206 = vmatpush1.msra.mxu0 0.0
        %1207 = vmatprep.subr.mxu0 0.0
        %1208 = vmatpush1.msra.mxu0 0.0
        %1209 = vmatprep.subr.mxu0 0.0
        %1210 = vmatpush1.msra.mxu0 0.0
        %1211 = vmatprep.subr.mxu0 0.0
        %1212 = vmatpush1.msra.mxu0 0.0
        %1213 = vmatprep.subr.mxu0 0.0
        %1214 = vmatpush1.msra.mxu0 0.0
        %1215 = vmatprep.subr.mxu0 0.0
        %1216 = vmatpush1.msra.mxu0 0.0
        %1217 = vmatprep.subr.mxu0 0.0
        %1218 = vmatpush1.msra.mxu0 0.0
        %1219 = vmatprep.subr.mxu0 0.0
        %1220 = vmatpush1.msra.mxu0 0.0
        %1221 = vmatprep.subr.mxu0 0.0
        %1222 = vmatpush1.msra.mxu0 0.0
        %1223 = vmatprep.subr.mxu0 0.0
        %1224 = vmatpush1.msra.mxu0 0.0
        %1225 = vmatprep.subr.mxu0 0.0
        %1226 = vmatpush1.msra.mxu0 0.0
        %1227 = vmatprep.subr.mxu0 0.0
        %1228 = vmatpush1.msra.mxu0 0.0
        %1229 = vmatprep.subr.mxu0 0.0
        %1230 = vmatpush1.msra.mxu0 0.0
        %1231 = vmatprep.subr.mxu0 0.0
        %1232 = vmatpush1.msra.mxu0 0.0
        %1233 = vmatprep.subr.mxu0 0.0
        %1234 = vmatpush1.msra.mxu0 0.0
        %1235 = vmatprep.subr.mxu0 0.0
        %1236 = vmatpush1.msra.mxu0 0.0
        %1237 = vmatprep.subr.mxu0 0.0
        %1238 = vmatpush1.msra.mxu0 0.0
        %1239 = vmatprep.subr.mxu0 0.0
        %1240 = vmatpush1.msra.mxu0 0.0
        %1241 = vmatprep.subr.mxu0 0.0
        %1242 = vmatpush1.msra.mxu0 0.0
        %1243 = vmatprep.subr.mxu0 0.0
        %1244 = vmatpush1.msra.mxu0 0.0
        %1245 = vmatprep.subr.mxu0 0.0
        %1246 = vmatpush1.msra.mxu0 0.0
        %1247 = vmatprep.subr.mxu0 0.0
        %1248 = vmatpush1.msra.mxu0 0.0
        %1249 = vmatprep.subr.mxu0 0.0
        %1250 = vmatpush1.msra.mxu0 0.0
        %1251 = vmatprep.subr.mxu0 0.0
        %1252 = vmatpush1.msra.mxu0 0.0
        %1253 = vmatprep.subr.mxu0 0.0
        %1254 = vmatpush1.msra.mxu0 0.0
        %1255 = vmatprep.mubr.f32.mxu0 0.0
        %1256 = vmatmul.mubr.f32.gmra.mrb[0].mxu0 %v1189
        %v1257 = vpop.f32.mrb[0].mxu0
        %v1258 = vadd.f32 %v1100, %v1257
        %v1259 = vpop.f32.mrb[0].mxu0
        %1260 = vdwg.mxu0
        %v1261 = vxor.u32 %v1258, 2147483648
        %v1262 = vmul.f32 %v1261, 1.442695
        %v1263 = vpow.pop %v1262
        %v1264 = vadd.f32 %v1263, 1.0
        %v1265 = vrcp.pop %v1264
        %v1266 = vmul.f32 1.0, %v1265
        %v1267 = vld [vmem:[%s3] sm:$0xff]
        %v1268 = vld [vmem:[%s3 + $0x8] sm:$0xff]
        %v1269 = vld [vmem:[%s3 + $0x10] sm:$0xff]
        %v1270 = vld [vmem:[%s3 + $0x18] sm:$0xff]
        %v1271 = vld [vmem:[%s4] sm:$0xff]
        %v1272 = vld [vmem:[%s4 + $0x8] sm:$0xff]
        %v1273 = vld [vmem:[%s4 + $0x10] sm:$0xff]
        %v1274 = vld [vmem:[%s4 + $0x18] sm:$0xff]
        %v1276 = vsel %vm926, %v1266, 0
        %1278 = vmatprep.subr.mxu0 %v1272
        %1279 = vmatpush1.msra.mxu0 %v1271
        %1280 = vmatprep.subr.mxu0 %v1274
        %1281 = vmatpush1.msra.mxu0 %v1273
        %1282 = vmatprep.subr.mxu0 0.0
        %1283 = vmatpush1.msra.mxu0 0.0
        %1284 = vmatprep.subr.mxu0 0.0
        %1285 = vmatpush1.msra.mxu0 0.0
        %1286 = vmatprep.subr.mxu0 0.0
        %1287 = vmatpush1.msra.mxu0 0.0
        %1288 = vmatprep.subr.mxu0 0.0
        %1289 = vmatpush1.msra.mxu0 0.0
        %1290 = vmatprep.subr.mxu0 0.0
        %1291 = vmatpush1.msra.mxu0 0.0
        %1292 = vmatprep.subr.mxu0 0.0
        %1293 = vmatpush1.msra.mxu0 0.0
        %1294 = vmatprep.subr.mxu0 0.0
        %1295 = vmatpush1.msra.mxu0 0.0
        %1296 = vmatprep.subr.mxu0 0.0
        %1297 = vmatpush1.msra.mxu0 0.0
        %1298 = vmatprep.subr.mxu0 0.0
        %1299 = vmatpush1.msra.mxu0 0.0
        %1300 = vmatprep.subr.mxu0 0.0
        %1301 = vmatpush1.msra.mxu0 0.0
        %1302 = vmatprep.subr.mxu0 0.0
        %1303 = vmatpush1.msra.mxu0 0.0
        %1304 = vmatprep.subr.mxu0 0.0
        %1305 = vmatpush1.msra.mxu0 0.0
        %1306 = vmatprep.subr.mxu0 0.0
        %1307 = vmatpush1.msra.mxu0 0.0
        %1308 = vmatprep.subr.mxu0 0.0
        %1309 = vmatpush1.msra.mxu0 0.0
        %1310 = vmatprep.subr.mxu0 0.0
        %1311 = vmatpush1.msra.mxu0 0.0
        %1312 = vmatprep.subr.mxu0 0.0
        %1313 = vmatpush1.msra.mxu0 0.0
        %1314 = vmatprep.subr.mxu0 0.0
        %1315 = vmatpush1.msra.mxu0 0.0
        %1316 = vmatprep.subr.mxu0 0.0
        %1317 = vmatpush1.msra.mxu0 0.0
        %1318 = vmatprep.subr.mxu0 0.0
        %1319 = vmatpush1.msra.mxu0 0.0
        %1320 = vmatprep.subr.mxu0 0.0
        %1321 = vmatpush1.msra.mxu0 0.0
        %1322 = vmatprep.subr.mxu0 0.0
        %1323 = vmatpush1.msra.mxu0 0.0
        %1324 = vmatprep.subr.mxu0 0.0
        %1325 = vmatpush1.msra.mxu0 0.0
        %1326 = vmatprep.subr.mxu0 0.0
        %1327 = vmatpush1.msra.mxu0 0.0
        %1328 = vmatprep.subr.mxu0 0.0
        %1329 = vmatpush1.msra.mxu0 0.0
        %1330 = vmatprep.subr.mxu0 0.0
        %1331 = vmatpush1.msra.mxu0 0.0
        %1332 = vmatprep.subr.mxu0 0.0
        %1333 = vmatpush1.msra.mxu0 0.0
        %1334 = vmatprep.subr.mxu0 0.0
        %1335 = vmatpush1.msra.mxu0 0.0
        %1336 = vmatprep.subr.mxu0 0.0
        %1337 = vmatpush1.msra.mxu0 0.0
        %1338 = vmatprep.subr.mxu0 0.0
        %1339 = vmatpush1.msra.mxu0 0.0
        %1340 = vmatprep.subr.mxu0 0.0
        %1341 = vmatpush1.msra.mxu0 0.0
        %1342 = vmatprep.mubr.f32.mxu0 0.0
        %1343 = vmatmul.mubr.f32.gmra.mrb[0].mxu0 %v1276
        %v1344 = vpop.f32.mrb[0].mxu0
        %v1345 = vadd.f32 0.0, %v1344
        %v1346 = vpop.f32.mrb[0].mxu0
        %v1347 = vadd.f32 0.0, %v1346
        %1348 = vdwg.mxu0
        %v1350 = vsel %vm926, %v1093, 0
        %1352 = vmatprep.subr.mxu0 %v1268
        %1353 = vmatpush1.msra.mxu0 %v1267
        %1354 = vmatprep.subr.mxu0 %v1270
        %1355 = vmatpush1.msra.mxu0 %v1269
        %1356 = vmatprep.subr.mxu0 0.0
        %1357 = vmatpush1.msra.mxu0 0.0
        %1358 = vmatprep.subr.mxu0 0.0
        %1359 = vmatpush1.msra.mxu0 0.0
        %1360 = vmatprep.subr.mxu0 0.0
        %1361 = vmatpush1.msra.mxu0 0.0
        %1362 = vmatprep.subr.mxu0 0.0
        %1363 = vmatpush1.msra.mxu0 0.0
        %1364 = vmatprep.subr.mxu0 0.0
        %1365 = vmatpush1.msra.mxu0 0.0
        %1366 = vmatprep.subr.mxu0 0.0
        %1367 = vmatpush1.msra.mxu0 0.0
        %1368 = vmatprep.subr.mxu0 0.0
        %1369 = vmatpush1.msra.mxu0 0.0
        %1370 = vmatprep.subr.mxu0 0.0
        %1371 = vmatpush1.msra.mxu0 0.0
        %1372 = vmatprep.subr.mxu0 0.0
        %1373 = vmatpush1.msra.mxu0 0.0
        %1374 = vmatprep.subr.mxu0 0.0
        %1375 = vmatpush1.msra.mxu0 0.0
        %1376 = vmatprep.subr.mxu0 0.0
        %1377 = vmatpush1.msra.mxu0 0.0
        %1378 = vmatprep.subr.mxu0 0.0
        %1379 = vmatpush1.msra.mxu0 0.0
        %1380 = vmatprep.subr.mxu0 0.0
        %1381 = vmatpush1.msra.mxu0 0.0
        %1382 = vmatprep.subr.mxu0 0.0
        %1383 = vmatpush1.msra.mxu0 0.0
        %1384 = vmatprep.subr.mxu0 0.0
        %1385 = vmatpush1.msra.mxu0 0.0
        %1386 = vmatprep.subr.mxu0 0.0
        %1387 = vmatpush1.msra.mxu0 0.0
        %1388 = vmatprep.subr.mxu0 0.0
        %1389 = vmatpush1.msra.mxu0 0.0
        %1390 = vmatprep.subr.mxu0 0.0
        %1391 = vmatpush1.msra.mxu0 0.0
        %1392 = vmatprep.subr.mxu0 0.0
        %1393 = vmatpush1.msra.mxu0 0.0
        %1394 = vmatprep.subr.mxu0 0.0
        %1395 = vmatpush1.msra.mxu0 0.0
        %1396 = vmatprep.subr.mxu0 0.0
        %1397 = vmatpush1.msra.mxu0 0.0
        %1398 = vmatprep.subr.mxu0 0.0
        %1399 = vmatpush1.msra.mxu0 0.0
        %1400 = vmatprep.subr.mxu0 0.0
        %1401 = vmatpush1.msra.mxu0 0.0
        %1402 = vmatprep.subr.mxu0 0.0
        %1403 = vmatpush1.msra.mxu0 0.0
        %1404 = vmatprep.subr.mxu0 0.0
        %1405 = vmatpush1.msra.mxu0 0.0
        %1406 = vmatprep.subr.mxu0 0.0
        %1407 = vmatpush1.msra.mxu0 0.0
        %1408 = vmatprep.subr.mxu0 0.0
        %1409 = vmatpush1.msra.mxu0 0.0
        %1410 = vmatprep.subr.mxu0 0.0
        %1411 = vmatpush1.msra.mxu0 0.0
        %1412 = vmatprep.subr.mxu0 0.0
        %1413 = vmatpush1.msra.mxu0 0.0
        %1414 = vmatprep.subr.mxu0 0.0
        %1415 = vmatpush1.msra.mxu0 0.0
        %1416 = vmatprep.mubr.f32.mxu0 0.0
        %1417 = vmatmul.mubr.f32.gmra.mrb[0].mxu0 %v1350
        %v1418 = vpop.f32.mrb[0].mxu0
        %v1419 = vadd.f32 %v1345, %v1418
        %v1420 = vpop.f32.mrb[0].mxu0
        %v1421 = vadd.f32 %v1347, %v1420
        %1422 = vdwg.mxu0
        %v1423 = vmul.f32 %v1419, %v711
        %v1424 = vmul.f32 %v1421, %v745
        %v1427 = vcombine.low %v1423, %v1424
        %1429 = vst [vmem:[%s669] sm:$0xff] %v1427
        %s1430 = sand.u32 %s457, 1
        %s1431 = scalar_lea.sflag [#allocation3], %s1430
        %s1432 = sand.u32 %s457, 1
        %s1433 = smul.addr %s1432, 8
        %s1434 = scalar_lea.vmem [#allocation2], %s1433
        // Predicated region
        $region89: #{tpu_custom_call.1} parent=87 // pred_check
          %p1435 = pneg %p467
        $region90: #{tpu_custom_call.1} parent=87 // pred_check_branch
          %1437 = sbr.rel (%p1435) target = $region92
        $region91: #{tpu_custom_call.1} parent=87 // pred_region
          %s1439 = ssub.s32 128, 128
          %1440 = vsyncadd %s1431, %s1439
          %s1441 = smul.addr %s36, 2
          %s1442 = smul.addr %s35, 2
          %s1443 = sadd.s32 %s1441, %s1442
          %s1444 = smul.addr %s1443, 64
          %s1445 = scalar_lea.hbm %s17, %s1444
          %s1447 = sshll.u32 %s1434, 4
          %s1448 = int_to_ptr.vmem [resolvable:$true] %s1447
          %1450 = dma.vmem_to_hbm [thread:$0]  %s1448, 128, %s1445, %s1431
        $region92: #{tpu_custom_call.1} parent=87 // pred_fallthru
          _
      $region88: #{tpu_custom_call.1} parent=5 // pred_fallthru
        _
      %p1451 = scmp.le.s32.totalorder 2, %s26
      // Predicated region
      $region93: #{tpu_custom_call.1} parent=5 // pred_check
        %p1452 = pneg %p1451
      $region94: #{tpu_custom_call.1} parent=5 // pred_check_branch
        %1454 = sbr.rel (%p1452) target = $region96
      $region95: #{tpu_custom_call.1} parent=5 // pred_region
        %s1455 = ssub.s32 %s26, 2
        // Predicated region
        $region97: #{tpu_custom_call.1} parent=95 // pred_check
          %p1456 = pneg %p473
        $region98: #{tpu_custom_call.1} parent=95 // pred_check_branch
          %1458 = sbr.rel (%p1456) target = $region100
        $region99: #{tpu_custom_call.1} parent=95 // pred_region
          %s1459 = sand.u32 %s458, 1
          %s1460 = scalar_lea.sflag [#allocation3], %s1459
          %s1461 = sand.u32 %s458, 1
          %s1462 = smul.addr %s1461, 8
          %s1463 = scalar_lea.vmem [#allocation2], %s1462
          %1464 = dma.done %s1460, 128
        $region100: #{tpu_custom_call.1} parent=95 // pred_fallthru
          _
      $region96: #{tpu_custom_call.1} parent=5 // pred_fallthru
        _
    $region6: #{tpu_custom_call.1} parent=1 // loop_footer
      %s30 = sadd.s32 1, %s26
    $region7: #{tpu_custom_call.1} parent=1 // loop_footer_branch
      %25 = sbr.rel target = $region3
    $region8: #{tpu_custom_call.1} parent=1 // loop_exit
      _
    %1465 = vsyncpa [#allocation3], 1
    %s1466 = scalar_lea.sflag [#allocation3], 1
    %1467 = vsyncpa %s1466, 1

</llo_original>
